<compile_context>
chip_gen: v6e
topology: v6e:2x2x1
jax: 0.10.0
libtpu: 0.0.40
codegen_flags: <defaults>
</compile_context>

<pallas_src>
import jax
import jax.numpy as jnp
from jax.experimental import pallas as pl
from jax.experimental.pallas import tpu as pltpu


def ff_kernel(x_ref, w1_ref, b1_ref, w2_ref, b2_ref, w3_ref, b3_ref,
              ws_ref, bs_ref, o_ref):
    cdt = w1_ref.dtype                       # compute dtype of the MXU operands
    x = x_ref[...].astype(cdt)               # no-op when weights are f32

    # Shortcut and layer-1 both consume x: issue back-to-back while x is live.
    shortcut = jnp.dot(x, ws_ref[...],
                       preferred_element_type=jnp.float32) + bs_ref[...]

    h = jnp.dot(x, w1_ref[...], preferred_element_type=jnp.float32) + b1_ref[...]
    h = jnp.maximum(h, 0.0)
    h = jnp.dot(h.astype(cdt), w2_ref[...],
                preferred_element_type=jnp.float32) + b2_ref[...]
    h = jnp.maximum(h, 0.0)
    h = jnp.dot(h.astype(cdt), w3_ref[...],
                preferred_element_type=jnp.float32) + b3_ref[...]
    h = jnp.maximum(h, 0.0)

    o_ref[...] = (h + shortcut).astype(o_ref.dtype)


def _round_up(x, m):
    return (x + m - 1) // m * m


def ff_forward(x, params, *, tm=256, weight_dtype=None,
               single_buffer_weights=True):
    """x: [N, D] float32. params: dict of w1,b1,w2,b2,w3,b3,ws,bs.

    Weights are stored [D_in, D_out] (already transposed vs. torch Linear)
    so the kernel does plain row-major x @ W on the MXU.
    `tm` is the row tile — sweep per generation (multiples of 256 on v6e/v7x,
    128 on v5e). `weight_dtype=jnp.bfloat16` halves weight VMEM/HBM traffic.
    """
    N, D = x.shape
    out_dtype = x.dtype
    wdt = weight_dtype or jnp.float32

    # ---- padding for lane-dense D and full-height row tiles -------------
    Dp = max(_round_up(D, 128), 128)
    Np8 = _round_up(max(N, 1), 8)
    if Np8 <= tm:                    # whole batch in one grid step
        tm_eff, Np = Np8, Np8
    else:
        tm_eff = _round_up(tm, 8)
        Np = _round_up(N, tm_eff)

    def pad_w(w):
        return jnp.pad(w.astype(wdt), ((0, Dp - D), (0, Dp - D)))

    def pad_b(b):
        return jnp.pad(b.astype(jnp.float32), ((0, 0), (0, Dp - D)))

    xp = jnp.pad(x.astype(jnp.float32), ((0, Np - N), (0, Dp - D)))
    flat = (pad_w(params["w1"]), pad_b(params["b1"]),
            pad_w(params["w2"]), pad_b(params["b2"]),
            pad_w(params["w3"]), pad_b(params["b3"]),
            pad_w(params["ws"]), pad_b(params["bs"]))

    # ---- VMEM budget + cost estimate -------------------------------------
    wbytes = jnp.dtype(wdt).itemsize
    n_wbuf = 1 if single_buffer_weights else 2
    vmem_need = (4 * Dp * Dp * wbytes + 4 * Dp * 4) * n_wbuf   # weights + biases
    vmem_need += 2 * 2 * tm_eff * Dp * 4                       # x / out double-buffers
    vmem_need += 6 * tm_eff * Dp * 4                           # live intermediates
    vmem_limit = int(min(max(vmem_need, 16 << 20), 64 << 20))  # fits v7x too

    cost = pl.CostEstimate(
        flops=8 * Np * Dp * Dp,                               # 4 matmuls, 2 flop/MAC
        transcendentals=0,
        bytes_accessed=int(2 * Np * Dp * 4 + 4 * Dp * Dp * wbytes + 4 * Dp * 4),
    )

    def build(single_buffer):
        if single_buffer and hasattr(pl, "Buffered"):
            extra = dict(pipeline_mode=pl.Buffered(1))   # grid-invariant operands
        else:
            extra = {}
        w_spec = pl.BlockSpec((Dp, Dp), lambda i: (0, 0), **extra)
        b_spec = pl.BlockSpec((1, Dp), lambda i: (0, 0), **extra)
        x_spec = pl.BlockSpec((tm_eff, Dp), lambda i: (i, 0))
        o_spec = pl.BlockSpec((tm_eff, Dp), lambda i: (i, 0))
        return pl.pallas_call(
            ff_kernel,
            out_shape=jax.ShapeDtypeStruct((Np, Dp), out_dtype),
            grid_spec=pltpu.PrefetchScalarGridSpec(
                num_scalar_prefetch=0,
                grid=(Np // tm_eff,),
                in_specs=[x_spec,
                          w_spec, b_spec,     # layer 1
                          w_spec, b_spec,     # layer 2
                          w_spec, b_spec,     # layer 3
                          w_spec, b_spec],    # shortcut
                out_specs=o_spec,
            ),
            compiler_params=pltpu.CompilerParams(
                dimension_semantics=("parallel",),
                vmem_limit_bytes=vmem_limit),
            cost_estimate=cost,
        )

    try:
        out_p = build(single_buffer_weights)(xp, *flat)
    except Exception:
        # Fallback: default double-buffered weights (older JAX / rejected
        # pipeline_mode). Same math, just more VMEM.
        out_p = build(False)(xp, *flat)

    return out_p[:N, :D]


def init_ff_params(key, input_dim):
    """Synthetic init mimicking nn.Linear shapes; weights stored [in, out]."""
    keys = jax.random.split(key, 8)
    bound = 1.0 / jnp.sqrt(input_dim)

    def lin(kw, kb):
        w = jax.random.uniform(kw, (input_dim, input_dim), jnp.float32,
                               -bound, bound)
        b = jax.random.uniform(kb, (1, input_dim), jnp.float32, -bound, bound)
        return w, b

    w1, b1 = lin(keys[0], keys[1])
    w2, b2 = lin(keys[2], keys[3])
    w3, b3 = lin(keys[4], keys[5])
    ws, bs = lin(keys[6], keys[7])
    return dict(w1=w1, b1=b1, w2=w2, b2=b2, w3=w3, b3=b3, ws=ws, bs=bs)


def ff_reference(x, p):
    h = jnp.maximum(x @ p["w1"] + p["b1"], 0.0)
    h = jnp.maximum(h @ p["w2"] + p["b2"], 0.0)
    h = jnp.maximum(h @ p["w3"] + p["b3"], 0.0)
    return h + (x @ p["ws"] + p["bs"])


if __name__ == "__main__":
    key = jax.random.PRNGKey(0)
    k_x, k_p = jax.random.split(key)

    N, D = 16, 32           # small demo shapes: batch=16, hidden=32
    x = jax.random.normal(k_x, (N, D), jnp.float32)
    params = init_ff_params(k_p, D)

    # f32 weights — exact check vs. reference.
    out = jax.block_until_ready(ff_forward(x, params, tm=256))
    ref = ff_reference(x, params)
    assert out.shape == (N, D)
    assert jnp.allclose(out, ref, atol=1e-5, rtol=1e-5), "f32 mismatch vs reference"

    # Ragged batch (exercises row padding / slicing).
    x2 = jax.random.normal(k_x, (37, D), jnp.float32)
    out2 = jax.block_until_ready(ff_forward(x2, params, tm=256))
    assert out2.shape == (37, D)
    assert jnp.allclose(out2, ff_reference(x2, params), atol=1e-5, rtol=1e-5), \
        "ragged-batch mismatch vs reference"

    # bf16 weights (half VMEM/HBM traffic, 2x MXU throughput), f32 accumulation.
    out_bf16 = jax.block_until_ready(
        ff_forward(x, params, tm=256, weight_dtype=jnp.bfloat16))
    assert out_bf16.shape == (N, D)
    assert jnp.allclose(out_bf16, ref, atol=1e-1, rtol=1e-1), "bf16 drifted too far"

    print("KERNEL_OK")
</pallas_src>

<mosaic_0001>
module attributes {stable_mosaic.version = 11 : i64} {
  func.func @ff_kernel(%arg0: i32, %arg1: memref<16x128xf32, #tpu.memory_space<vmem>>, %arg2: memref<128x128xf32, #tpu.memory_space<vmem>>, %arg3: memref<1x128xf32, #tpu.memory_space<vmem>>, %arg4: memref<128x128xf32, #tpu.memory_space<vmem>>, %arg5: memref<1x128xf32, #tpu.memory_space<vmem>>, %arg6: memref<128x128xf32, #tpu.memory_space<vmem>>, %arg7: memref<1x128xf32, #tpu.memory_space<vmem>>, %arg8: memref<128x128xf32, #tpu.memory_space<vmem>>, %arg9: memref<1x128xf32, #tpu.memory_space<vmem>>, %arg10: memref<16x128xf32, #tpu.memory_space<vmem>>) attributes {dimension_semantics = [#tpu.dimension_semantics<parallel>], iteration_bounds = array<i64: 1>, scalar_prefetch = 0 : i64, scratch_operands = 0 : i64, tpu.core_type = #tpu.core_type<tc>, window_params = [{transform_indices = @transform_0, window_bounds = array<i64: 16, 128>}, {pipeline_mode = #tpu.pipeline_mode<synchronous>, transform_indices = @transform_1, window_bounds = array<i64: 128, 128>}, {pipeline_mode = #tpu.pipeline_mode<synchronous>, transform_indices = @transform_2, window_bounds = array<i64: 1, 128>}, {pipeline_mode = #tpu.pipeline_mode<synchronous>, transform_indices = @transform_3, window_bounds = array<i64: 128, 128>}, {pipeline_mode = #tpu.pipeline_mode<synchronous>, transform_indices = @transform_4, window_bounds = array<i64: 1, 128>}, {pipeline_mode = #tpu.pipeline_mode<synchronous>, transform_indices = @transform_5, window_bounds = array<i64: 128, 128>}, {pipeline_mode = #tpu.pipeline_mode<synchronous>, transform_indices = @transform_6, window_bounds = array<i64: 1, 128>}, {pipeline_mode = #tpu.pipeline_mode<synchronous>, transform_indices = @transform_7, window_bounds = array<i64: 128, 128>}, {pipeline_mode = #tpu.pipeline_mode<synchronous>, transform_indices = @transform_8, window_bounds = array<i64: 1, 128>}, {transform_indices = @transform_9, window_bounds = array<i64: 16, 128>}]} {
    %c0 = arith.constant 0 : index
    %c0_0 = arith.constant 0 : index
    %0 = vector.load %arg1[%c0, %c0_0] : memref<16x128xf32, #tpu.memory_space<vmem>>, vector<16x128xf32>
    %c0_1 = arith.constant 0 : index
    %c0_2 = arith.constant 0 : index
    %1 = vector.load %arg8[%c0_1, %c0_2] : memref<128x128xf32, #tpu.memory_space<vmem>>, vector<128x128xf32>
    %cst = arith.constant dense<0.000000e+00> : vector<16x128xf32>
    %2 = tpu.matmul %0, %1, %cst {dimension_numbers = #tpu.dot_dimension_numbers<[1], [0], [0], [1], [0, 0, 1, 1], [], []>} : vector<16x128xf32>, vector<128x128xf32>, vector<16x128xf32> -> vector<16x128xf32>
    %c0_3 = arith.constant 0 : index
    %c0_4 = arith.constant 0 : index
    %3 = vector.load %arg9[%c0_3, %c0_4] : memref<1x128xf32, #tpu.memory_space<vmem>>, vector<1x128xf32>
    %4 = vector.broadcast %3 : vector<1x128xf32> to vector<16x128xf32>
    %5 = arith.addf %2, %4 : vector<16x128xf32>
    %c0_5 = arith.constant 0 : index
    %c0_6 = arith.constant 0 : index
    %6 = vector.load %arg2[%c0_5, %c0_6] : memref<128x128xf32, #tpu.memory_space<vmem>>, vector<128x128xf32>
    %cst_7 = arith.constant dense<0.000000e+00> : vector<16x128xf32>
    %7 = tpu.matmul %0, %6, %cst_7 {dimension_numbers = #tpu.dot_dimension_numbers<[1], [0], [0], [1], [0, 0, 1, 1], [], []>} : vector<16x128xf32>, vector<128x128xf32>, vector<16x128xf32> -> vector<16x128xf32>
    %c0_8 = arith.constant 0 : index
    %c0_9 = arith.constant 0 : index
    %8 = vector.load %arg3[%c0_8, %c0_9] : memref<1x128xf32, #tpu.memory_space<vmem>>, vector<1x128xf32>
    %9 = vector.broadcast %8 : vector<1x128xf32> to vector<16x128xf32>
    %10 = arith.addf %7, %9 : vector<16x128xf32>
    %cst_10 = arith.constant 0.000000e+00 : f32
    %11 = vector.broadcast %cst_10 : f32 to vector<16x128xf32>
    %12 = arith.maximumf %10, %11 : vector<16x128xf32>
    %c0_11 = arith.constant 0 : index
    %c0_12 = arith.constant 0 : index
    %13 = vector.load %arg4[%c0_11, %c0_12] : memref<128x128xf32, #tpu.memory_space<vmem>>, vector<128x128xf32>
    %cst_13 = arith.constant dense<0.000000e+00> : vector<16x128xf32>
    %14 = tpu.matmul %12, %13, %cst_13 {dimension_numbers = #tpu.dot_dimension_numbers<[1], [0], [0], [1], [0, 0, 1, 1], [], []>} : vector<16x128xf32>, vector<128x128xf32>, vector<16x128xf32> -> vector<16x128xf32>
    %c0_14 = arith.constant 0 : index
    %c0_15 = arith.constant 0 : index
    %15 = vector.load %arg5[%c0_14, %c0_15] : memref<1x128xf32, #tpu.memory_space<vmem>>, vector<1x128xf32>
    %16 = vector.broadcast %15 : vector<1x128xf32> to vector<16x128xf32>
    %17 = arith.addf %14, %16 : vector<16x128xf32>
    %cst_16 = arith.constant 0.000000e+00 : f32
    %18 = vector.broadcast %cst_16 : f32 to vector<16x128xf32>
    %19 = arith.maximumf %17, %18 : vector<16x128xf32>
    %c0_17 = arith.constant 0 : index
    %c0_18 = arith.constant 0 : index
    %20 = vector.load %arg6[%c0_17, %c0_18] : memref<128x128xf32, #tpu.memory_space<vmem>>, vector<128x128xf32>
    %cst_19 = arith.constant dense<0.000000e+00> : vector<16x128xf32>
    %21 = tpu.matmul %19, %20, %cst_19 {dimension_numbers = #tpu.dot_dimension_numbers<[1], [0], [0], [1], [0, 0, 1, 1], [], []>} : vector<16x128xf32>, vector<128x128xf32>, vector<16x128xf32> -> vector<16x128xf32>
    %c0_20 = arith.constant 0 : index
    %c0_21 = arith.constant 0 : index
    %22 = vector.load %arg7[%c0_20, %c0_21] : memref<1x128xf32, #tpu.memory_space<vmem>>, vector<1x128xf32>
    %23 = vector.broadcast %22 : vector<1x128xf32> to vector<16x128xf32>
    %24 = arith.addf %21, %23 : vector<16x128xf32>
    %cst_22 = arith.constant 0.000000e+00 : f32
    %25 = vector.broadcast %cst_22 : f32 to vector<16x128xf32>
    %26 = arith.maximumf %24, %25 : vector<16x128xf32>
    %27 = arith.addf %26, %5 : vector<16x128xf32>
    %c0_23 = arith.constant 0 : index
    %c0_24 = arith.constant 0 : index
    %28 = vector.load %arg10[%c0_23, %c0_24] : memref<16x128xf32, #tpu.memory_space<vmem>>, vector<16x128xf32>
    tpu.vector_store %arg10[%c0_23, %c0_24], %27 {strides = array<i32>} : memref<16x128xf32, #tpu.memory_space<vmem>>, vector<16x128xf32>,
    return
  }
  func.func @transform_0(%arg0: i32) -> (i32, i32) {
    %c0_i32 = arith.constant 0 : i32
    %c0_i32_0 = arith.constant 0 : i32
    return %arg0, %c0_i32 : i32, i32
  }
  func.func @transform_1(%arg0: i32) -> (i32, i32) {
    %c0_i32 = arith.constant 0 : i32
    %c0_i32_0 = arith.constant 0 : i32
    %c0_i32_1 = arith.constant 0 : i32
    return %c0_i32, %c0_i32_0 : i32, i32
  }
  func.func @transform_2(%arg0: i32) -> (i32, i32) {
    %c0_i32 = arith.constant 0 : i32
    %c0_i32_0 = arith.constant 0 : i32
    %c0_i32_1 = arith.constant 0 : i32
    return %c0_i32, %c0_i32_0 : i32, i32
  }
  func.func @transform_3(%arg0: i32) -> (i32, i32) {
    %c0_i32 = arith.constant 0 : i32
    %c0_i32_0 = arith.constant 0 : i32
    %c0_i32_1 = arith.constant 0 : i32
    return %c0_i32, %c0_i32_0 : i32, i32
  }
  func.func @transform_4(%arg0: i32) -> (i32, i32) {
    %c0_i32 = arith.constant 0 : i32
    %c0_i32_0 = arith.constant 0 : i32
    %c0_i32_1 = arith.constant 0 : i32
    return %c0_i32, %c0_i32_0 : i32, i32
  }
  func.func @transform_5(%arg0: i32) -> (i32, i32) {
    %c0_i32 = arith.constant 0 : i32
    %c0_i32_0 = arith.constant 0 : i32
    %c0_i32_1 = arith.constant 0 : i32
    return %c0_i32, %c0_i32_0 : i32, i32
  }
  func.func @transform_6(%arg0: i32) -> (i32, i32) {
    %c0_i32 = arith.constant 0 : i32
    %c0_i32_0 = arith.constant 0 : i32
    %c0_i32_1 = arith.constant 0 : i32
    return %c0_i32, %c0_i32_0 : i32, i32
  }
  func.func @transform_7(%arg0: i32) -> (i32, i32) {
    %c0_i32 = arith.constant 0 : i32
    %c0_i32_0 = arith.constant 0 : i32
    %c0_i32_1 = arith.constant 0 : i32
    return %c0_i32, %c0_i32_0 : i32, i32
  }
  func.func @transform_8(%arg0: i32) -> (i32, i32) {
    %c0_i32 = arith.constant 0 : i32
    %c0_i32_0 = arith.constant 0 : i32
    %c0_i32_1 = arith.constant 0 : i32
    return %c0_i32, %c0_i32_0 : i32, i32
  }
  func.func @transform_9(%arg0: i32) -> (i32, i32) {
    %c0_i32 = arith.constant 0 : i32
    %c0_i32_0 = arith.constant 0 : i32
    return %arg0, %c0_i32 : i32, i32
  }
}

module attributes {stable_mosaic.version = 11 : i64} {
  func.func @ff_kernel(%arg0: i32, %arg1: memref<16x128xf32, #tpu.memory_space<vmem>>, %arg2: memref<128x128xf32, #tpu.memory_space<vmem>>, %arg3: memref<1x128xf32, #tpu.memory_space<vmem>>, %arg4: memref<128x128xf32, #tpu.memory_space<vmem>>, %arg5: memref<1x128xf32, #tpu.memory_space<vmem>>, %arg6: memref<128x128xf32, #tpu.memory_space<vmem>>, %arg7: memref<1x128xf32, #tpu.memory_space<vmem>>, %arg8: memref<128x128xf32, #tpu.memory_space<vmem>>, %arg9: memref<1x128xf32, #tpu.memory_space<vmem>>, %arg10: memref<16x128xf32, #tpu.memory_space<vmem>>) attributes {dimension_semantics = [#tpu.dimension_semantics<parallel>], iteration_bounds = array<i64: 1>, scalar_prefetch = 0 : i64, scratch_operands = 0 : i64, tpu.core_type = #tpu.core_type<tc>, window_params = [{transform_indices = @transform_0, window_bounds = array<i64: 16, 128>}, {pipeline_mode = #tpu.pipeline_mode<synchronous>, transform_indices = @transform_1, window_bounds = array<i64: 128, 128>}, {pipeline_mode = #tpu.pipeline_mode<synchronous>, transform_indices = @transform_2, window_bounds = array<i64: 1, 128>}, {pipeline_mode = #tpu.pipeline_mode<synchronous>, transform_indices = @transform_3, window_bounds = array<i64: 128, 128>}, {pipeline_mode = #tpu.pipeline_mode<synchronous>, transform_indices = @transform_4, window_bounds = array<i64: 1, 128>}, {pipeline_mode = #tpu.pipeline_mode<synchronous>, transform_indices = @transform_5, window_bounds = array<i64: 128, 128>}, {pipeline_mode = #tpu.pipeline_mode<synchronous>, transform_indices = @transform_6, window_bounds = array<i64: 1, 128>}, {pipeline_mode = #tpu.pipeline_mode<synchronous>, transform_indices = @transform_7, window_bounds = array<i64: 128, 128>}, {pipeline_mode = #tpu.pipeline_mode<synchronous>, transform_indices = @transform_8, window_bounds = array<i64: 1, 128>}, {transform_indices = @transform_9, window_bounds = array<i64: 16, 128>}]} {
    %c0 = arith.constant 0 : index
    %c0_0 = arith.constant 0 : index
    %0 = vector.load %arg1[%c0, %c0_0] : memref<16x128xf32, #tpu.memory_space<vmem>>, vector<16x128xf32>
    %c0_1 = arith.constant 0 : index
    %c0_2 = arith.constant 0 : index
    %1 = vector.load %arg8[%c0_1, %c0_2] : memref<128x128xf32, #tpu.memory_space<vmem>>, vector<128x128xf32>
    %cst = arith.constant dense<0.000000e+00> : vector<16x128xf32>
    %2 = tpu.matmul %0, %1, %cst {dimension_numbers = #tpu.dot_dimension_numbers<[1], [0], [0], [1], [0, 0, 1, 1], [], []>} : vector<16x128xf32>, vector<128x128xf32>, vector<16x128xf32> -> vector<16x128xf32>
    %c0_3 = arith.constant 0 : index
    %c0_4 = arith.constant 0 : index
    %3 = vector.load %arg9[%c0_3, %c0_4] : memref<1x128xf32, #tpu.memory_space<vmem>>, vector<1x128xf32>
    %4 = vector.broadcast %3 : vector<1x128xf32> to vector<16x128xf32>
    %5 = arith.addf %2, %4 : vector<16x128xf32>
    %c0_5 = arith.constant 0 : index
    %c0_6 = arith.constant 0 : index
    %6 = vector.load %arg2[%c0_5, %c0_6] : memref<128x128xf32, #tpu.memory_space<vmem>>, vector<128x128xf32>
    %cst_7 = arith.constant dense<0.000000e+00> : vector<16x128xf32>
    %7 = tpu.matmul %0, %6, %cst_7 {dimension_numbers = #tpu.dot_dimension_numbers<[1], [0], [0], [1], [0, 0, 1, 1], [], []>} : vector<16x128xf32>, vector<128x128xf32>, vector<16x128xf32> -> vector<16x128xf32>
    %c0_8 = arith.constant 0 : index
    %c0_9 = arith.constant 0 : index
    %8 = vector.load %arg3[%c0_8, %c0_9] : memref<1x128xf32, #tpu.memory_space<vmem>>, vector<1x128xf32>
    %9 = vector.broadcast %8 : vector<1x128xf32> to vector<16x128xf32>
    %10 = arith.addf %7, %9 : vector<16x128xf32>
    %cst_10 = arith.constant 0.000000e+00 : f32
    %11 = vector.broadcast %cst_10 : f32 to vector<16x128xf32>
    %12 = arith.maximumf %10, %11 : vector<16x128xf32>
    %c0_11 = arith.constant 0 : index
    %c0_12 = arith.constant 0 : index
    %13 = vector.load %arg4[%c0_11, %c0_12] : memref<128x128xf32, #tpu.memory_space<vmem>>, vector<128x128xf32>
    %cst_13 = arith.constant dense<0.000000e+00> : vector<16x128xf32>
    %14 = tpu.matmul %12, %13, %cst_13 {dimension_numbers = #tpu.dot_dimension_numbers<[1], [0], [0], [1], [0, 0, 1, 1], [], []>} : vector<16x128xf32>, vector<128x128xf32>, vector<16x128xf32> -> vector<16x128xf32>
    %c0_14 = arith.constant 0 : index
    %c0_15 = arith.constant 0 : index
    %15 = vector.load %arg5[%c0_14, %c0_15] : memref<1x128xf32, #tpu.memory_space<vmem>>, vector<1x128xf32>
    %16 = vector.broadcast %15 : vector<1x128xf32> to vector<16x128xf32>
    %17 = arith.addf %14, %16 : vector<16x128xf32>
    %cst_16 = arith.constant 0.000000e+00 : f32
    %18 = vector.broadcast %cst_16 : f32 to vector<16x128xf32>
    %19 = arith.maximumf %17, %18 : vector<16x128xf32>
    %c0_17 = arith.constant 0 : index
    %c0_18 = arith.constant 0 : index
    %20 = vector.load %arg6[%c0_17, %c0_18] : memref<128x128xf32, #tpu.memory_space<vmem>>, vector<128x128xf32>
    %cst_19 = arith.constant dense<0.000000e+00> : vector<16x128xf32>
    %21 = tpu.matmul %19, %20, %cst_19 {dimension_numbers = #tpu.dot_dimension_numbers<[1], [0], [0], [1], [0, 0, 1, 1], [], []>} : vector<16x128xf32>, vector<128x128xf32>, vector<16x128xf32> -> vector<16x128xf32>
    %c0_20 = arith.constant 0 : index
    %c0_21 = arith.constant 0 : index
    %22 = vector.load %arg7[%c0_20, %c0_21] : memref<1x128xf32, #tpu.memory_space<vmem>>, vector<1x128xf32>
    %23 = vector.broadcast %22 : vector<1x128xf32> to vector<16x128xf32>
    %24 = arith.addf %21, %23 : vector<16x128xf32>
    %cst_22 = arith.constant 0.000000e+00 : f32
    %25 = vector.broadcast %cst_22 : f32 to vector<16x128xf32>
    %26 = arith.maximumf %24, %25 : vector<16x128xf32>
    %27 = arith.addf %26, %5 : vector<16x128xf32>
    %c0_23 = arith.constant 0 : index
    %c0_24 = arith.constant 0 : index
    %28 = vector.load %arg10[%c0_23, %c0_24] : memref<16x128xf32, #tpu.memory_space<vmem>>, vector<16x128xf32>
    tpu.vector_store %arg10[%c0_23, %c0_24], %27 {strides = array<i32>} : memref<16x128xf32, #tpu.memory_space<vmem>>, vector<16x128xf32>,
    return
  }
  func.func @transform_0(%arg0: i32) -> (i32, i32) {
    %c0_i32 = arith.constant 0 : i32
    %c0_i32_0 = arith.constant 0 : i32
    return %arg0, %c0_i32 : i32, i32
  }
  func.func @transform_1(%arg0: i32) -> (i32, i32) {
    %c0_i32 = arith.constant 0 : i32
    %c0_i32_0 = arith.constant 0 : i32
    %c0_i32_1 = arith.constant 0 : i32
    return %c0_i32, %c0_i32_0 : i32, i32
  }
  func.func @transform_2(%arg0: i32) -> (i32, i32) {
    %c0_i32 = arith.constant 0 : i32
    %c0_i32_0 = arith.constant 0 : i32
    %c0_i32_1 = arith.constant 0 : i32
    return %c0_i32, %c0_i32_0 : i32, i32
  }
  func.func @transform_3(%arg0: i32) -> (i32, i32) {
    %c0_i32 = arith.constant 0 : i32
    %c0_i32_0 = arith.constant 0 : i32
    %c0_i32_1 = arith.constant 0 : i32
    return %c0_i32, %c0_i32_0 : i32, i32
  }
  func.func @transform_4(%arg0: i32) -> (i32, i32) {
    %c0_i32 = arith.constant 0 : i32
    %c0_i32_0 = arith.constant 0 : i32
    %c0_i32_1 = arith.constant 0 : i32
    return %c0_i32, %c0_i32_0 : i32, i32
  }
  func.func @transform_5(%arg0: i32) -> (i32, i32) {
    %c0_i32 = arith.constant 0 : i32
    %c0_i32_0 = arith.constant 0 : i32
    %c0_i32_1 = arith.constant 0 : i32
    return %c0_i32, %c0_i32_0 : i32, i32
  }
  func.func @transform_6(%arg0: i32) -> (i32, i32) {
    %c0_i32 = arith.constant 0 : i32
    %c0_i32_0 = arith.constant 0 : i32
    %c0_i32_1 = arith.constant 0 : i32
    return %c0_i32, %c0_i32_0 : i32, i32
  }
  func.func @transform_7(%arg0: i32) -> (i32, i32) {
    %c0_i32 = arith.constant 0 : i32
    %c0_i32_0 = arith.constant 0 : i32
    %c0_i32_1 = arith.constant 0 : i32
    return %c0_i32, %c0_i32_0 : i32, i32
  }
  func.func @transform_8(%arg0: i32) -> (i32, i32) {
    %c0_i32 = arith.constant 0 : i32
    %c0_i32_0 = arith.constant 0 : i32
    %c0_i32_1 = arith.constant 0 : i32
    return %c0_i32, %c0_i32_0 : i32, i32
  }
  func.func @transform_9(%arg0: i32) -> (i32, i32) {
    %c0_i32 = arith.constant 0 : i32
    %c0_i32_0 = arith.constant 0 : i32
    return %arg0, %c0_i32 : i32, i32
  }
}

</mosaic_0001>

<llo_original>
// kernel: tpu_custom_call.1
$region0: #{tpu_custom_call.1}
  #allocation0 [shape = 'u32[]', space=smem, size = 0x4, offset = 0x4, fixed_abs, tag = 'smem constant byte address 0x4 - core index']
  #allocation1 [shape = 'u32[144,128]{1,0:T(1,128)}', space=vmem, size = 0x12000, scoped, tag = 'internal scratch']
  %s0 = inlined_call_operand.hbm [shape: f32[16,128], index: 0, kind: input, shape index: {}]
  %s1 = inlined_call_operand.hbm [shape: f32[128,128], index: 1, kind: input, shape index: {}]
  %s2 = inlined_call_operand.vmem [shape: f32[1,128], index: 2, kind: input, shape index: {}]
  %s3 = inlined_call_operand.hbm [shape: f32[128,128], index: 3, kind: input, shape index: {}]
  %s4 = inlined_call_operand.vmem [shape: f32[1,128], index: 4, kind: input, shape index: {}]
  %s5 = inlined_call_operand.hbm [shape: f32[128,128], index: 5, kind: input, shape index: {}]
  %s6 = inlined_call_operand.vmem [shape: f32[1,128], index: 6, kind: input, shape index: {}]
  %s7 = inlined_call_operand.hbm [shape: f32[128,128], index: 7, kind: input, shape index: {}]
  %s8 = inlined_call_operand.vmem [shape: f32[1,128], index: 8, kind: input, shape index: {}]
  %s9 = inlined_call_operand.hbm [shape: f32[16,128], index: 9, kind: output, shape index: {}]
  %s10 = sld [smem:[#allocation0]]
  $region66: #{tpu_custom_call.1} parent=0
    _
  %s12 = ssub.s32 1, %s10
  %s13 = scalar_select 0, %s12, %s10
  $region1: #{tpu_custom_call.1} parent=0
    #allocation2 [shape = 'u8[8192]{0}', space=vmem, size = 0x2000, scoped, tag = 'input window, operand 0, single buffered']
    #allocation3 [shape = 's32[1]{0}', space=sflag, size = 0x4, scoped, tag = 'scoped memory for tpu_custom_call.1']
    #allocation4 [shape = 's32[1]{0}', space=sflag, size = 0x4, scoped, tag = 'scoped memory for tpu_custom_call.1']
    #allocation5 [shape = 'u8[65536]{0}', space=vmem, size = 0x10000, scoped, tag = 'input window, operand 1, single buffered']
    #allocation6 [shape = 's32[1]{0}', space=sflag, size = 0x4, scoped, tag = 'scoped memory for tpu_custom_call.1']
    #allocation7 [shape = 'u8[65536]{0}', space=vmem, size = 0x10000, scoped, tag = 'input window, operand 3, single buffered']
    #allocation8 [shape = 'u8[65536]{0}', space=vmem, size = 0x10000, scoped, tag = 'input window, operand 5, single buffered']
    #allocation9 [shape = 's32[1]{0}', space=sflag, size = 0x4, scoped, tag = 'scoped memory for tpu_custom_call.1']
    #allocation10 [shape = 'u8[65536]{0}', space=vmem, size = 0x10000, scoped, tag = 'input window, operand 7, single buffered']
    #allocation11 [shape = 'u8[8192]{0}', space=vmem, size = 0x2000, scoped, tag = 'output window, operand 0, single buffered']
    %14 = vsyncpa [#allocation3], 0
    %15 = vsyncpa [#allocation6], 0
    %16 = vsyncpa [#allocation9], 0
    %17 = vsyncpa [#allocation4], 0
    // Predicated region
    $region2: #{tpu_custom_call.1} parent=1 // pred_check
      _
    $region3: #{tpu_custom_call.1} parent=1 // pred_check_branch
      %19 = sbr.rel (0) target = $region5
    $region4: #{tpu_custom_call.1} parent=1 // pred_region
      %s21 = ssub.s32 256, 256
      %22 = vsyncadd [#allocation3], %s21
      %s23 = sshll.u32 [#allocation2], 4
      %s24 = int_to_ptr.vmem [resolvable:$true] %s23
      %29 = dma.hbm_to_vmem [thread:$0]  %s0, 256, %s24, [#allocation3], 128, 128, 8
    $region5: #{tpu_custom_call.1} parent=1 // pred_fallthru
      _
    // Predicated region
    $region6: #{tpu_custom_call.1} parent=1 // pred_check
      _
    $region7: #{tpu_custom_call.1} parent=1 // pred_check_branch
      %31 = sbr.rel (0) target = $region9
    $region8: #{tpu_custom_call.1} parent=1 // pred_region
      %s33 = ssub.s32 2048, 2048
      %34 = vsyncadd [#allocation6], %s33
      %s35 = sshll.u32 [#allocation5], 4
      %s36 = int_to_ptr.vmem [resolvable:$true] %s35
      %41 = dma.hbm_to_vmem [thread:$0]  %s1, 2048, %s36, [#allocation6], 128, 128, 8
    $region9: #{tpu_custom_call.1} parent=1 // pred_fallthru
      _
    // Predicated region
    $region10: #{tpu_custom_call.1} parent=1 // pred_check
      _
    $region11: #{tpu_custom_call.1} parent=1 // pred_check_branch
      %43 = sbr.rel (0) target = $region13
    $region12: #{tpu_custom_call.1} parent=1 // pred_region
      _
    $region13: #{tpu_custom_call.1} parent=1 // pred_fallthru
      _
    // Predicated region
    $region14: #{tpu_custom_call.1} parent=1 // pred_check
      _
    $region15: #{tpu_custom_call.1} parent=1 // pred_check_branch
      %45 = sbr.rel (0) target = $region17
    $region16: #{tpu_custom_call.1} parent=1 // pred_region
      %s47 = ssub.s32 2048, 2048
      %48 = vsyncadd [#allocation6], %s47
      %s49 = sshll.u32 [#allocation7], 4
      %s50 = int_to_ptr.vmem [resolvable:$true] %s49
      %55 = dma.hbm_to_vmem [thread:$0]  %s3, 2048, %s50, [#allocation6], 128, 128, 8
    $region17: #{tpu_custom_call.1} parent=1 // pred_fallthru
      _
    // Predicated region
    $region18: #{tpu_custom_call.1} parent=1 // pred_check
      _
    $region19: #{tpu_custom_call.1} parent=1 // pred_check_branch
      %57 = sbr.rel (0) target = $region21
    $region20: #{tpu_custom_call.1} parent=1 // pred_region
      _
    $region21: #{tpu_custom_call.1} parent=1 // pred_fallthru
      _
    // Predicated region
    $region22: #{tpu_custom_call.1} parent=1 // pred_check
      _
    $region23: #{tpu_custom_call.1} parent=1 // pred_check_branch
      %59 = sbr.rel (0) target = $region25
    $region24: #{tpu_custom_call.1} parent=1 // pred_region
      %s61 = ssub.s32 2048, 2048
      %62 = vsyncadd [#allocation9], %s61
      %s63 = sshll.u32 [#allocation8], 4
      %s64 = int_to_ptr.vmem [resolvable:$true] %s63
      %69 = dma.hbm_to_vmem [thread:$0]  %s5, 2048, %s64, [#allocation9], 128, 128, 8
    $region25: #{tpu_custom_call.1} parent=1 // pred_fallthru
      _
    // Predicated region
    $region26: #{tpu_custom_call.1} parent=1 // pred_check
      _
    $region27: #{tpu_custom_call.1} parent=1 // pred_check_branch
      %71 = sbr.rel (0) target = $region29
    $region28: #{tpu_custom_call.1} parent=1 // pred_region
      _
    $region29: #{tpu_custom_call.1} parent=1 // pred_fallthru
      _
    // Predicated region
    $region30: #{tpu_custom_call.1} parent=1 // pred_check
      _
    $region31: #{tpu_custom_call.1} parent=1 // pred_check_branch
      %73 = sbr.rel (0) target = $region33
    $region32: #{tpu_custom_call.1} parent=1 // pred_region
      %s75 = ssub.s32 2048, 2048
      %76 = vsyncadd [#allocation9], %s75
      %s77 = sshll.u32 [#allocation10], 4
      %s78 = int_to_ptr.vmem [resolvable:$true] %s77
      %83 = dma.hbm_to_vmem [thread:$0]  %s7, 2048, %s78, [#allocation9], 128, 128, 8
    $region33: #{tpu_custom_call.1} parent=1 // pred_fallthru
      _
    // Predicated region
    $region34: #{tpu_custom_call.1} parent=1 // pred_check
      _
    $region35: #{tpu_custom_call.1} parent=1 // pred_check_branch
      %85 = sbr.rel (0) target = $region37
    $region36: #{tpu_custom_call.1} parent=1 // pred_region
      _
    $region37: #{tpu_custom_call.1} parent=1 // pred_fallthru
      _
    // Predicated region
    $region38: #{tpu_custom_call.1} parent=1 // pred_check
      _
    $region39: #{tpu_custom_call.1} parent=1 // pred_check_branch
      %87 = sbr.rel (0) target = $region41
    $region40: #{tpu_custom_call.1} parent=1 // pred_region
      %88 = dma.done [#allocation3], 256
    $region41: #{tpu_custom_call.1} parent=1 // pred_fallthru
      _
    // Predicated region
    $region42: #{tpu_custom_call.1} parent=1 // pred_check
      _
    $region43: #{tpu_custom_call.1} parent=1 // pred_check_branch
      %90 = sbr.rel (0) target = $region45
    $region44: #{tpu_custom_call.1} parent=1 // pred_region
      %91 = dma.done [#allocation6], 2048
    $region45: #{tpu_custom_call.1} parent=1 // pred_fallthru
      _
    // Predicated region
    $region46: #{tpu_custom_call.1} parent=1 // pred_check
      _
    $region47: #{tpu_custom_call.1} parent=1 // pred_check_branch
      %93 = sbr.rel (0) target = $region49
    $region48: #{tpu_custom_call.1} parent=1 // pred_region
      %94 = dma.done [#allocation6], 2048
    $region49: #{tpu_custom_call.1} parent=1 // pred_fallthru
      _
    // Predicated region
    $region50: #{tpu_custom_call.1} parent=1 // pred_check
      _
    $region51: #{tpu_custom_call.1} parent=1 // pred_check_branch
      %96 = sbr.rel (0) target = $region53
    $region52: #{tpu_custom_call.1} parent=1 // pred_region
      %97 = dma.done [#allocation9], 2048
    $region53: #{tpu_custom_call.1} parent=1 // pred_fallthru
      _
    // Predicated region
    $region54: #{tpu_custom_call.1} parent=1 // pred_check
      _
    $region55: #{tpu_custom_call.1} parent=1 // pred_check_branch
      %99 = sbr.rel (0) target = $region57
    $region56: #{tpu_custom_call.1} parent=1 // pred_region
      %100 = dma.done [#allocation9], 2048
    $region57: #{tpu_custom_call.1} parent=1 // pred_fallthru
      _
    %v101 = vld [vmem:[#allocation2] sm:$0xff]
    %v102 = vld [vmem:[#allocation2 + $0x8] sm:$0xff]
    %v103 = vld [vmem:[#allocation10] sm:$0xff]
    %v104 = vld [vmem:[#allocation10 + $0x8] sm:$0xff]
    %v105 = vld [vmem:[#allocation10 + $0x10] sm:$0xff]
    %v106 = vld [vmem:[#allocation10 + $0x18] sm:$0xff]
    %v107 = vld [vmem:[#allocation10 + $0x20] sm:$0xff]
    %v108 = vld [vmem:[#allocation10 + $0x28] sm:$0xff]
    %v109 = vld [vmem:[#allocation10 + $0x30] sm:$0xff]
    %v110 = vld [vmem:[#allocation10 + $0x38] sm:$0xff]
    %v111 = vld [vmem:[#allocation10 + $0x40] sm:$0xff]
    %v112 = vld [vmem:[#allocation10 + $0x48] sm:$0xff]
    %v113 = vld [vmem:[#allocation10 + $0x50] sm:$0xff]
    %v114 = vld [vmem:[#allocation10 + $0x58] sm:$0xff]
    %v115 = vld [vmem:[#allocation10 + $0x60] sm:$0xff]
    %v116 = vld [vmem:[#allocation10 + $0x68] sm:$0xff]
    %v117 = vld [vmem:[#allocation10 + $0x70] sm:$0xff]
    %v118 = vld [vmem:[#allocation10 + $0x78] sm:$0xff]
    %v119 = vld [vmem:[%s8] sm:$0x1]
    %v121 = vlaneseq
    %v122 = vshrl.u32 %v121, 7
    %v123 = vsub.s32 0, %v122
    %v124 = vrot.slane %v119, %v123
    %126 = vmatprep.subr.mxu0 0.0
    %127 = vmatpush1.msra.mxu0 %v118
    %128 = vmatprep.subr.mxu0 0.0
    %129 = vmatpush1.msra.mxu0 %v117
    %130 = vmatprep.subr.mxu0 0.0
    %131 = vmatpush1.msra.mxu0 %v116
    %132 = vmatprep.subr.mxu0 0.0
    %133 = vmatpush1.msra.mxu0 %v115
    %134 = vmatprep.subr.mxu0 0.0
    %135 = vmatpush1.msra.mxu0 %v114
    %136 = vmatprep.subr.mxu0 0.0
    %137 = vmatpush1.msra.mxu0 %v113
    %138 = vmatprep.subr.mxu0 0.0
    %139 = vmatpush1.msra.mxu0 %v112
    %140 = vmatprep.subr.mxu0 0.0
    %141 = vmatpush1.msra.mxu0 %v111
    %142 = vmatprep.subr.mxu0 0.0
    %143 = vmatpush1.msra.mxu0 %v110
    %144 = vmatprep.subr.mxu0 0.0
    %145 = vmatpush1.msra.mxu0 %v109
    %146 = vmatprep.subr.mxu0 0.0
    %147 = vmatpush1.msra.mxu0 %v108
    %148 = vmatprep.subr.mxu0 0.0
    %149 = vmatpush1.msra.mxu0 %v107
    %150 = vmatprep.subr.mxu0 0.0
    %151 = vmatpush1.msra.mxu0 %v106
    %152 = vmatprep.subr.mxu0 0.0
    %153 = vmatpush1.msra.mxu0 %v105
    %154 = vmatprep.subr.mxu0 0.0
    %155 = vmatpush1.msra.mxu0 %v104
    %156 = vmatprep.subr.mxu0 0.0
    %157 = vmatpush1.msra.mxu0 %v103
    %158 = vmatprep.subr.mxu0 0.0
    %159 = vmatpush2.msra.mxu0 0.0
    %160 = vmatprep.subr.mxu0 0.0
    %161 = vmatpush2.msra.mxu0 0.0
    %162 = vmatprep.subr.mxu0 0.0
    %163 = vmatpush2.msra.mxu0 0.0
    %164 = vmatprep.subr.mxu0 0.0
    %165 = vmatpush2.msra.mxu0 0.0
    %166 = vmatprep.subr.mxu0 0.0
    %167 = vmatpush2.msra.mxu0 0.0
    %168 = vmatprep.subr.mxu0 0.0
    %169 = vmatpush2.msra.mxu0 0.0
    %170 = vmatprep.subr.mxu0 0.0
    %171 = vmatpush2.msra.mxu0 0.0
    %172 = vmatprep.subr.mxu0 0.0
    %173 = vmatpush2.msra.mxu0 0.0
    %174 = vmatprep.subr.mxu0 0.0
    %175 = vmatpush2.msra.mxu0 0.0
    %176 = vmatprep.subr.mxu0 0.0
    %177 = vmatpush2.msra.mxu0 0.0
    %178 = vmatprep.subr.mxu0 0.0
    %179 = vmatpush2.msra.mxu0 0.0
    %180 = vmatprep.subr.mxu0 0.0
    %181 = vmatpush2.msra.mxu0 0.0
    %182 = vmatprep.subr.mxu0 0.0
    %183 = vmatpush2.msra.mxu0 0.0
    %184 = vmatprep.subr.mxu0 0.0
    %185 = vmatpush2.msra.mxu0 0.0
    %186 = vmatprep.subr.mxu0 0.0
    %187 = vmatpush2.msra.mxu0 0.0
    %188 = vmatprep.subr.mxu0 0.0
    %189 = vmatpush2.msra.mxu0 0.0
    %190 = vmatprep.mubr.f32.mxu0 0.0
    %191 = vmatmul.mubr.f32.gmra.mxu0 %v101
    %v192 = vpop.f32.mrf.mxu0
    %v193 = vadd.f32 %v124, %v192
    %v194 = vpop.f32.mrf.mxu0
    %195 = vmatprep.mubr.f32.mxu0 0.0
    %196 = vmatmul.mubr.f32.gmra.mxu0 %v102
    %v197 = vpop.f32.mrf.mxu0
    %v198 = vadd.f32 %v124, %v197
    %v199 = vpop.f32.mrf.mxu0
    %200 = vdwg.mxu0
    %v201 = vld [vmem:[#allocation5] sm:$0xff]
    %v202 = vld [vmem:[#allocation5 + $0x8] sm:$0xff]
    %v203 = vld [vmem:[#allocation5 + $0x10] sm:$0xff]
    %v204 = vld [vmem:[#allocation5 + $0x18] sm:$0xff]
    %v205 = vld [vmem:[#allocation5 + $0x20] sm:$0xff]
    %v206 = vld [vmem:[#allocation5 + $0x28] sm:$0xff]
    %v207 = vld [vmem:[#allocation5 + $0x30] sm:$0xff]
    %v208 = vld [vmem:[#allocation5 + $0x38] sm:$0xff]
    %v209 = vld [vmem:[#allocation5 + $0x40] sm:$0xff]
    %v210 = vld [vmem:[#allocation5 + $0x48] sm:$0xff]
    %v211 = vld [vmem:[#allocation5 + $0x50] sm:$0xff]
    %v212 = vld [vmem:[#allocation5 + $0x58] sm:$0xff]
    %v213 = vld [vmem:[#allocation5 + $0x60] sm:$0xff]
    %v214 = vld [vmem:[#allocation5 + $0x68] sm:$0xff]
    %v215 = vld [vmem:[#allocation5 + $0x70] sm:$0xff]
    %v216 = vld [vmem:[#allocation5 + $0x78] sm:$0xff]
    %v217 = vld [vmem:[%s2] sm:$0x1]
    %v219 = vlaneseq
    %v220 = vshrl.u32 %v219, 7
    %v221 = vsub.s32 0, %v220
    %v222 = vrot.slane %v217, %v221
    %224 = vmatprep.subr.mxu0 0.0
    %225 = vmatpush1.msra.mxu0 %v216
    %226 = vmatprep.subr.mxu0 0.0
    %227 = vmatpush1.msra.mxu0 %v215
    %228 = vmatprep.subr.mxu0 0.0
    %229 = vmatpush1.msra.mxu0 %v214
    %230 = vmatprep.subr.mxu0 0.0
    %231 = vmatpush1.msra.mxu0 %v213
    %232 = vmatprep.subr.mxu0 0.0
    %233 = vmatpush1.msra.mxu0 %v212
    %234 = vmatprep.subr.mxu0 0.0
    %235 = vmatpush1.msra.mxu0 %v211
    %236 = vmatprep.subr.mxu0 0.0
    %237 = vmatpush1.msra.mxu0 %v210
    %238 = vmatprep.subr.mxu0 0.0
    %239 = vmatpush1.msra.mxu0 %v209
    %240 = vmatprep.subr.mxu0 0.0
    %241 = vmatpush1.msra.mxu0 %v208
    %242 = vmatprep.subr.mxu0 0.0
    %243 = vmatpush1.msra.mxu0 %v207
    %244 = vmatprep.subr.mxu0 0.0
    %245 = vmatpush1.msra.mxu0 %v206
    %246 = vmatprep.subr.mxu0 0.0
    %247 = vmatpush1.msra.mxu0 %v205
    %248 = vmatprep.subr.mxu0 0.0
    %249 = vmatpush1.msra.mxu0 %v204
    %250 = vmatprep.subr.mxu0 0.0
    %251 = vmatpush1.msra.mxu0 %v203
    %252 = vmatprep.subr.mxu0 0.0
    %253 = vmatpush1.msra.mxu0 %v202
    %254 = vmatprep.subr.mxu0 0.0
    %255 = vmatpush1.msra.mxu0 %v201
    %256 = vmatprep.subr.mxu0 0.0
    %257 = vmatpush2.msra.mxu0 0.0
    %258 = vmatprep.subr.mxu0 0.0
    %259 = vmatpush2.msra.mxu0 0.0
    %260 = vmatprep.subr.mxu0 0.0
    %261 = vmatpush2.msra.mxu0 0.0
    %262 = vmatprep.subr.mxu0 0.0
    %263 = vmatpush2.msra.mxu0 0.0
    %264 = vmatprep.subr.mxu0 0.0
    %265 = vmatpush2.msra.mxu0 0.0
    %266 = vmatprep.subr.mxu0 0.0
    %267 = vmatpush2.msra.mxu0 0.0
    %268 = vmatprep.subr.mxu0 0.0
    %269 = vmatpush2.msra.mxu0 0.0
    %270 = vmatprep.subr.mxu0 0.0
    %271 = vmatpush2.msra.mxu0 0.0
    %272 = vmatprep.subr.mxu0 0.0
    %273 = vmatpush2.msra.mxu0 0.0
    %274 = vmatprep.subr.mxu0 0.0
    %275 = vmatpush2.msra.mxu0 0.0
    %276 = vmatprep.subr.mxu0 0.0
    %277 = vmatpush2.msra.mxu0 0.0
    %278 = vmatprep.subr.mxu0 0.0
    %279 = vmatpush2.msra.mxu0 0.0
    %280 = vmatprep.subr.mxu0 0.0
    %281 = vmatpush2.msra.mxu0 0.0
    %282 = vmatprep.subr.mxu0 0.0
    %283 = vmatpush2.msra.mxu0 0.0
    %284 = vmatprep.subr.mxu0 0.0
    %285 = vmatpush2.msra.mxu0 0.0
    %286 = vmatprep.subr.mxu0 0.0
    %287 = vmatpush2.msra.mxu0 0.0
    %288 = vmatprep.mubr.f32.mxu0 0.0
    %289 = vmatmul.mubr.f32.gmra.mxu0 %v101
    %v290 = vpop.f32.mrf.mxu0
    %v291 = vadd.f32 %v222, %v290
    %v292 = vpop.f32.mrf.mxu0
    %293 = vmatprep.mubr.f32.mxu0 0.0
    %294 = vmatmul.mubr.f32.gmra.mxu0 %v102
    %v295 = vpop.f32.mrf.mxu0
    %v296 = vadd.f32 %v222, %v295
    %v297 = vpop.f32.mrf.mxu0
    %298 = vdwg.mxu0
    %v299 = vmax.f32 %v291, 0.0
    %v300 = vmax.f32 %v296, 0.0
    %v301 = vld [vmem:[#allocation7] sm:$0xff]
    %v302 = vld [vmem:[#allocation7 + $0x8] sm:$0xff]
    %v303 = vld [vmem:[#allocation7 + $0x10] sm:$0xff]
    %v304 = vld [vmem:[#allocation7 + $0x18] sm:$0xff]
    %v305 = vld [vmem:[#allocation7 + $0x20] sm:$0xff]
    %v306 = vld [vmem:[#allocation7 + $0x28] sm:$0xff]
    %v307 = vld [vmem:[#allocation7 + $0x30] sm:$0xff]
    %v308 = vld [vmem:[#allocation7 + $0x38] sm:$0xff]
    %v309 = vld [vmem:[#allocation7 + $0x40] sm:$0xff]
    %v310 = vld [vmem:[#allocation7 + $0x48] sm:$0xff]
    %v311 = vld [vmem:[#allocation7 + $0x50] sm:$0xff]
    %v312 = vld [vmem:[#allocation7 + $0x58] sm:$0xff]
    %v313 = vld [vmem:[#allocation7 + $0x60] sm:$0xff]
    %v314 = vld [vmem:[#allocation7 + $0x68] sm:$0xff]
    %v315 = vld [vmem:[#allocation7 + $0x70] sm:$0xff]
    %v316 = vld [vmem:[#allocation7 + $0x78] sm:$0xff]
    %v317 = vld [vmem:[%s4] sm:$0x1]
    %v319 = vlaneseq
    %v320 = vshrl.u32 %v319, 7
    %v321 = vsub.s32 0, %v320
    %v322 = vrot.slane %v317, %v321
    %324 = vmatprep.subr.mxu0 0.0
    %325 = vmatpush1.msra.mxu0 %v316
    %326 = vmatprep.subr.mxu0 0.0
    %327 = vmatpush1.msra.mxu0 %v315
    %328 = vmatprep.subr.mxu0 0.0
    %329 = vmatpush1.msra.mxu0 %v314
    %330 = vmatprep.subr.mxu0 0.0
    %331 = vmatpush1.msra.mxu0 %v313
    %332 = vmatprep.subr.mxu0 0.0
    %333 = vmatpush1.msra.mxu0 %v312
    %334 = vmatprep.subr.mxu0 0.0
    %335 = vmatpush1.msra.mxu0 %v311
    %336 = vmatprep.subr.mxu0 0.0
    %337 = vmatpush1.msra.mxu0 %v310
    %338 = vmatprep.subr.mxu0 0.0
    %339 = vmatpush1.msra.mxu0 %v309
    %340 = vmatprep.subr.mxu0 0.0
    %341 = vmatpush1.msra.mxu0 %v308
    %342 = vmatprep.subr.mxu0 0.0
    %343 = vmatpush1.msra.mxu0 %v307
    %344 = vmatprep.subr.mxu0 0.0
    %345 = vmatpush1.msra.mxu0 %v306
    %346 = vmatprep.subr.mxu0 0.0
    %347 = vmatpush1.msra.mxu0 %v305
    %348 = vmatprep.subr.mxu0 0.0
    %349 = vmatpush1.msra.mxu0 %v304
    %350 = vmatprep.subr.mxu0 0.0
    %351 = vmatpush1.msra.mxu0 %v303
    %352 = vmatprep.subr.mxu0 0.0
    %353 = vmatpush1.msra.mxu0 %v302
    %354 = vmatprep.subr.mxu0 0.0
    %355 = vmatpush1.msra.mxu0 %v301
    %356 = vmatprep.subr.mxu0 0.0
    %357 = vmatpush2.msra.mxu0 0.0
    %358 = vmatprep.subr.mxu0 0.0
    %359 = vmatpush2.msra.mxu0 0.0
    %360 = vmatprep.subr.mxu0 0.0
    %361 = vmatpush2.msra.mxu0 0.0
    %362 = vmatprep.subr.mxu0 0.0
    %363 = vmatpush2.msra.mxu0 0.0
    %364 = vmatprep.subr.mxu0 0.0
    %365 = vmatpush2.msra.mxu0 0.0
    %366 = vmatprep.subr.mxu0 0.0
    %367 = vmatpush2.msra.mxu0 0.0
    %368 = vmatprep.subr.mxu0 0.0
    %369 = vmatpush2.msra.mxu0 0.0
    %370 = vmatprep.subr.mxu0 0.0
    %371 = vmatpush2.msra.mxu0 0.0
    %372 = vmatprep.subr.mxu0 0.0
    %373 = vmatpush2.msra.mxu0 0.0
    %374 = vmatprep.subr.mxu0 0.0
    %375 = vmatpush2.msra.mxu0 0.0
    %376 = vmatprep.subr.mxu0 0.0
    %377 = vmatpush2.msra.mxu0 0.0
    %378 = vmatprep.subr.mxu0 0.0
    %379 = vmatpush2.msra.mxu0 0.0
    %380 = vmatprep.subr.mxu0 0.0
    %381 = vmatpush2.msra.mxu0 0.0
    %382 = vmatprep.subr.mxu0 0.0
    %383 = vmatpush2.msra.mxu0 0.0
    %384 = vmatprep.subr.mxu0 0.0
    %385 = vmatpush2.msra.mxu0 0.0
    %386 = vmatprep.subr.mxu0 0.0
    %387 = vmatpush2.msra.mxu0 0.0
    %388 = vmatprep.mubr.f32.mxu0 0.0
    %389 = vmatmul.mubr.f32.gmra.mxu0 %v299
    %v390 = vpop.f32.mrf.mxu0
    %v391 = vadd.f32 %v322, %v390
    %v392 = vpop.f32.mrf.mxu0
    %393 = vmatprep.mubr.f32.mxu0 0.0
    %394 = vmatmul.mubr.f32.gmra.mxu0 %v300
    %v395 = vpop.f32.mrf.mxu0
    %v396 = vadd.f32 %v322, %v395
    %v397 = vpop.f32.mrf.mxu0
    %398 = vdwg.mxu0
    %v399 = vmax.f32 %v391, 0.0
    %v400 = vmax.f32 %v396, 0.0
    %v401 = vld [vmem:[#allocation8] sm:$0xff]
    %v402 = vld [vmem:[#allocation8 + $0x8] sm:$0xff]
    %v403 = vld [vmem:[#allocation8 + $0x10] sm:$0xff]
    %v404 = vld [vmem:[#allocation8 + $0x18] sm:$0xff]
    %v405 = vld [vmem:[#allocation8 + $0x20] sm:$0xff]
    %v406 = vld [vmem:[#allocation8 + $0x28] sm:$0xff]
    %v407 = vld [vmem:[#allocation8 + $0x30] sm:$0xff]
    %v408 = vld [vmem:[#allocation8 + $0x38] sm:$0xff]
    %v409 = vld [vmem:[#allocation8 + $0x40] sm:$0xff]
    %v410 = vld [vmem:[#allocation8 + $0x48] sm:$0xff]
    %v411 = vld [vmem:[#allocation8 + $0x50] sm:$0xff]
    %v412 = vld [vmem:[#allocation8 + $0x58] sm:$0xff]
    %v413 = vld [vmem:[#allocation8 + $0x60] sm:$0xff]
    %v414 = vld [vmem:[#allocation8 + $0x68] sm:$0xff]
    %v415 = vld [vmem:[#allocation8 + $0x70] sm:$0xff]
    %v416 = vld [vmem:[#allocation8 + $0x78] sm:$0xff]
    %v417 = vld [vmem:[%s6] sm:$0x1]
    %v419 = vlaneseq
    %v420 = vshrl.u32 %v419, 7
    %v421 = vsub.s32 0, %v420
    %v422 = vrot.slane %v417, %v421
    %424 = vmatprep.subr.mxu0 0.0
    %425 = vmatpush1.msra.mxu0 %v416
    %426 = vmatprep.subr.mxu0 0.0
    %427 = vmatpush1.msra.mxu0 %v415
    %428 = vmatprep.subr.mxu0 0.0
    %429 = vmatpush1.msra.mxu0 %v414
    %430 = vmatprep.subr.mxu0 0.0
    %431 = vmatpush1.msra.mxu0 %v413
    %432 = vmatprep.subr.mxu0 0.0
    %433 = vmatpush1.msra.mxu0 %v412
    %434 = vmatprep.subr.mxu0 0.0
    %435 = vmatpush1.msra.mxu0 %v411
    %436 = vmatprep.subr.mxu0 0.0
    %437 = vmatpush1.msra.mxu0 %v410
    %438 = vmatprep.subr.mxu0 0.0
    %439 = vmatpush1.msra.mxu0 %v409
    %440 = vmatprep.subr.mxu0 0.0
    %441 = vmatpush1.msra.mxu0 %v408
    %442 = vmatprep.subr.mxu0 0.0
    %443 = vmatpush1.msra.mxu0 %v407
    %444 = vmatprep.subr.mxu0 0.0
    %445 = vmatpush1.msra.mxu0 %v406
    %446 = vmatprep.subr.mxu0 0.0
    %447 = vmatpush1.msra.mxu0 %v405
    %448 = vmatprep.subr.mxu0 0.0
    %449 = vmatpush1.msra.mxu0 %v404
    %450 = vmatprep.subr.mxu0 0.0
    %451 = vmatpush1.msra.mxu0 %v403
    %452 = vmatprep.subr.mxu0 0.0
    %453 = vmatpush1.msra.mxu0 %v402
    %454 = vmatprep.subr.mxu0 0.0
    %455 = vmatpush1.msra.mxu0 %v401
    %456 = vmatprep.subr.mxu0 0.0
    %457 = vmatpush2.msra.mxu0 0.0
    %458 = vmatprep.subr.mxu0 0.0
    %459 = vmatpush2.msra.mxu0 0.0
    %460 = vmatprep.subr.mxu0 0.0
    %461 = vmatpush2.msra.mxu0 0.0
    %462 = vmatprep.subr.mxu0 0.0
    %463 = vmatpush2.msra.mxu0 0.0
    %464 = vmatprep.subr.mxu0 0.0
    %465 = vmatpush2.msra.mxu0 0.0
    %466 = vmatprep.subr.mxu0 0.0
    %467 = vmatpush2.msra.mxu0 0.0
    %468 = vmatprep.subr.mxu0 0.0
    %469 = vmatpush2.msra.mxu0 0.0
    %470 = vmatprep.subr.mxu0 0.0
    %471 = vmatpush2.msra.mxu0 0.0
    %472 = vmatprep.subr.mxu0 0.0
    %473 = vmatpush2.msra.mxu0 0.0
    %474 = vmatprep.subr.mxu0 0.0
    %475 = vmatpush2.msra.mxu0 0.0
    %476 = vmatprep.subr.mxu0 0.0
    %477 = vmatpush2.msra.mxu0 0.0
    %478 = vmatprep.subr.mxu0 0.0
    %479 = vmatpush2.msra.mxu0 0.0
    %480 = vmatprep.subr.mxu0 0.0
    %481 = vmatpush2.msra.mxu0 0.0
    %482 = vmatprep.subr.mxu0 0.0
    %483 = vmatpush2.msra.mxu0 0.0
    %484 = vmatprep.subr.mxu0 0.0
    %485 = vmatpush2.msra.mxu0 0.0
    %486 = vmatprep.subr.mxu0 0.0
    %487 = vmatpush2.msra.mxu0 0.0
    %488 = vmatprep.mubr.f32.mxu0 0.0
    %489 = vmatmul.mubr.f32.gmra.mxu0 %v399
    %v490 = vpop.f32.mrf.mxu0
    %v491 = vadd.f32 %v422, %v490
    %v492 = vpop.f32.mrf.mxu0
    %493 = vmatprep.mubr.f32.mxu0 0.0
    %494 = vmatmul.mubr.f32.gmra.mxu0 %v400
    %v495 = vpop.f32.mrf.mxu0
    %v496 = vadd.f32 %v422, %v495
    %v497 = vpop.f32.mrf.mxu0
    %498 = vdwg.mxu0
    %v499 = vmax.f32 %v491, 0.0
    %v500 = vmax.f32 %v496, 0.0
    %v501 = vadd.f32 %v499, %v193
    %v502 = vadd.f32 %v500, %v198
    %503 = vst [vmem:[#allocation11] sm:$0xff] %v501
    %504 = vst [vmem:[#allocation11 + $0x8] sm:$0xff] %v502
    // Predicated region
    $region58: #{tpu_custom_call.1} parent=1 // pred_check
      _
    $region59: #{tpu_custom_call.1} parent=1 // pred_check_branch
      %506 = sbr.rel (0) target = $region61
    $region60: #{tpu_custom_call.1} parent=1 // pred_region
      %s508 = ssub.s32 256, 256
      %509 = vsyncadd [#allocation4], %s508
      %s510 = sshll.u32 [#allocation11], 4
      %s511 = int_to_ptr.vmem [resolvable:$true] %s510
      %516 = dma.vmem_to_hbm [thread:$0]  %s511, 256, %s9, [#allocation4], 128, 128, 8
    $region61: #{tpu_custom_call.1} parent=1 // pred_fallthru
      _
    // Predicated region
    $region62: #{tpu_custom_call.1} parent=1 // pred_check
      _
    $region63: #{tpu_custom_call.1} parent=1 // pred_check_branch
      %518 = sbr.rel (0) target = $region65
    $region64: #{tpu_custom_call.1} parent=1 // pred_region
      %519 = dma.done [#allocation4], 256
    $region65: #{tpu_custom_call.1} parent=1 // pred_fallthru
      _
    %520 = vsyncpa [#allocation3], 1
    %521 = vsyncpa [#allocation6], 1
    %522 = vsyncpa [#allocation9], 1
    %523 = vsyncpa [#allocation4], 1

// kernel: tpu_custom_call.1
$region0: #{tpu_custom_call.1}
  #allocation0 [shape = 'u32[]', space=smem, size = 0x4, offset = 0x4, fixed_abs, tag = 'smem constant byte address 0x4 - core index']
  #allocation1 [shape = 'u32[144,128]{1,0:T(1,128)}', space=vmem, size = 0x12000, scoped, tag = 'internal scratch']
  %s0 = inlined_call_operand.hbm [shape: f32[16,128], index: 0, kind: input, shape index: {}]
  %s1 = inlined_call_operand.hbm [shape: f32[128,128], index: 1, kind: input, shape index: {}]
  %s2 = inlined_call_operand.vmem [shape: f32[1,128], index: 2, kind: input, shape index: {}]
  %s3 = inlined_call_operand.hbm [shape: f32[128,128], index: 3, kind: input, shape index: {}]
  %s4 = inlined_call_operand.vmem [shape: f32[1,128], index: 4, kind: input, shape index: {}]
  %s5 = inlined_call_operand.hbm [shape: f32[128,128], index: 5, kind: input, shape index: {}]
  %s6 = inlined_call_operand.vmem [shape: f32[1,128], index: 6, kind: input, shape index: {}]
  %s7 = inlined_call_operand.hbm [shape: f32[128,128], index: 7, kind: input, shape index: {}]
  %s8 = inlined_call_operand.vmem [shape: f32[1,128], index: 8, kind: input, shape index: {}]
  %s9 = inlined_call_operand.hbm [shape: f32[16,128], index: 9, kind: output, shape index: {}]
  %s10 = sld [smem:[#allocation0]]
  $region66: #{tpu_custom_call.1} parent=0
    _
  %s12 = ssub.s32 1, %s10
  %s13 = scalar_select 0, %s12, %s10
  $region1: #{tpu_custom_call.1} parent=0
    #allocation2 [shape = 'u8[8192]{0}', space=vmem, size = 0x2000, scoped, tag = 'input window, operand 0, single buffered']
    #allocation3 [shape = 's32[1]{0}', space=sflag, size = 0x4, scoped, tag = 'scoped memory for tpu_custom_call.1']
    #allocation4 [shape = 's32[1]{0}', space=sflag, size = 0x4, scoped, tag = 'scoped memory for tpu_custom_call.1']
    #allocation5 [shape = 'u8[65536]{0}', space=vmem, size = 0x10000, scoped, tag = 'input window, operand 1, single buffered']
    #allocation6 [shape = 's32[1]{0}', space=sflag, size = 0x4, scoped, tag = 'scoped memory for tpu_custom_call.1']
    #allocation7 [shape = 'u8[65536]{0}', space=vmem, size = 0x10000, scoped, tag = 'input window, operand 3, single buffered']
    #allocation8 [shape = 'u8[65536]{0}', space=vmem, size = 0x10000, scoped, tag = 'input window, operand 5, single buffered']
    #allocation9 [shape = 's32[1]{0}', space=sflag, size = 0x4, scoped, tag = 'scoped memory for tpu_custom_call.1']
    #allocation10 [shape = 'u8[65536]{0}', space=vmem, size = 0x10000, scoped, tag = 'input window, operand 7, single buffered']
    #allocation11 [shape = 'u8[8192]{0}', space=vmem, size = 0x2000, scoped, tag = 'output window, operand 0, single buffered']
    %14 = vsyncpa [#allocation3], 0
    %15 = vsyncpa [#allocation6], 0
    %16 = vsyncpa [#allocation9], 0
    %17 = vsyncpa [#allocation4], 0
    // Predicated region
    $region2: #{tpu_custom_call.1} parent=1 // pred_check
      _
    $region3: #{tpu_custom_call.1} parent=1 // pred_check_branch
      %19 = sbr.rel (0) target = $region5
    $region4: #{tpu_custom_call.1} parent=1 // pred_region
      %s21 = ssub.s32 256, 256
      %22 = vsyncadd [#allocation3], %s21
      %s23 = sshll.u32 [#allocation2], 4
      %s24 = int_to_ptr.vmem [resolvable:$true] %s23
      %29 = dma.hbm_to_vmem [thread:$0]  %s0, 256, %s24, [#allocation3], 128, 128, 8
    $region5: #{tpu_custom_call.1} parent=1 // pred_fallthru
      _
    // Predicated region
    $region6: #{tpu_custom_call.1} parent=1 // pred_check
      _
    $region7: #{tpu_custom_call.1} parent=1 // pred_check_branch
      %31 = sbr.rel (0) target = $region9
    $region8: #{tpu_custom_call.1} parent=1 // pred_region
      %s33 = ssub.s32 2048, 2048
      %34 = vsyncadd [#allocation6], %s33
      %s35 = sshll.u32 [#allocation5], 4
      %s36 = int_to_ptr.vmem [resolvable:$true] %s35
      %41 = dma.hbm_to_vmem [thread:$0]  %s1, 2048, %s36, [#allocation6], 128, 128, 8
    $region9: #{tpu_custom_call.1} parent=1 // pred_fallthru
      _
    // Predicated region
    $region10: #{tpu_custom_call.1} parent=1 // pred_check
      _
    $region11: #{tpu_custom_call.1} parent=1 // pred_check_branch
      %43 = sbr.rel (0) target = $region13
    $region12: #{tpu_custom_call.1} parent=1 // pred_region
      _
    $region13: #{tpu_custom_call.1} parent=1 // pred_fallthru
      _
    // Predicated region
    $region14: #{tpu_custom_call.1} parent=1 // pred_check
      _
    $region15: #{tpu_custom_call.1} parent=1 // pred_check_branch
      %45 = sbr.rel (0) target = $region17
    $region16: #{tpu_custom_call.1} parent=1 // pred_region
      %s47 = ssub.s32 2048, 2048
      %48 = vsyncadd [#allocation6], %s47
      %s49 = sshll.u32 [#allocation7], 4
      %s50 = int_to_ptr.vmem [resolvable:$true] %s49
      %55 = dma.hbm_to_vmem [thread:$0]  %s3, 2048, %s50, [#allocation6], 128, 128, 8
    $region17: #{tpu_custom_call.1} parent=1 // pred_fallthru
      _
    // Predicated region
    $region18: #{tpu_custom_call.1} parent=1 // pred_check
      _
    $region19: #{tpu_custom_call.1} parent=1 // pred_check_branch
      %57 = sbr.rel (0) target = $region21
    $region20: #{tpu_custom_call.1} parent=1 // pred_region
      _
    $region21: #{tpu_custom_call.1} parent=1 // pred_fallthru
      _
    // Predicated region
    $region22: #{tpu_custom_call.1} parent=1 // pred_check
      _
    $region23: #{tpu_custom_call.1} parent=1 // pred_check_branch
      %59 = sbr.rel (0) target = $region25
    $region24: #{tpu_custom_call.1} parent=1 // pred_region
      %s61 = ssub.s32 2048, 2048
      %62 = vsyncadd [#allocation9], %s61
      %s63 = sshll.u32 [#allocation8], 4
      %s64 = int_to_ptr.vmem [resolvable:$true] %s63
      %69 = dma.hbm_to_vmem [thread:$0]  %s5, 2048, %s64, [#allocation9], 128, 128, 8
    $region25: #{tpu_custom_call.1} parent=1 // pred_fallthru
      _
    // Predicated region
    $region26: #{tpu_custom_call.1} parent=1 // pred_check
      _
    $region27: #{tpu_custom_call.1} parent=1 // pred_check_branch
      %71 = sbr.rel (0) target = $region29
    $region28: #{tpu_custom_call.1} parent=1 // pred_region
      _
    $region29: #{tpu_custom_call.1} parent=1 // pred_fallthru
      _
    // Predicated region
    $region30: #{tpu_custom_call.1} parent=1 // pred_check
      _
    $region31: #{tpu_custom_call.1} parent=1 // pred_check_branch
      %73 = sbr.rel (0) target = $region33
    $region32: #{tpu_custom_call.1} parent=1 // pred_region
      %s75 = ssub.s32 2048, 2048
      %76 = vsyncadd [#allocation9], %s75
      %s77 = sshll.u32 [#allocation10], 4
      %s78 = int_to_ptr.vmem [resolvable:$true] %s77
      %83 = dma.hbm_to_vmem [thread:$0]  %s7, 2048, %s78, [#allocation9], 128, 128, 8
    $region33: #{tpu_custom_call.1} parent=1 // pred_fallthru
      _
    // Predicated region
    $region34: #{tpu_custom_call.1} parent=1 // pred_check
      _
    $region35: #{tpu_custom_call.1} parent=1 // pred_check_branch
      %85 = sbr.rel (0) target = $region37
    $region36: #{tpu_custom_call.1} parent=1 // pred_region
      _
    $region37: #{tpu_custom_call.1} parent=1 // pred_fallthru
      _
    // Predicated region
    $region38: #{tpu_custom_call.1} parent=1 // pred_check
      _
    $region39: #{tpu_custom_call.1} parent=1 // pred_check_branch
      %87 = sbr.rel (0) target = $region41
    $region40: #{tpu_custom_call.1} parent=1 // pred_region
      %88 = dma.done [#allocation3], 256
    $region41: #{tpu_custom_call.1} parent=1 // pred_fallthru
      _
    // Predicated region
    $region42: #{tpu_custom_call.1} parent=1 // pred_check
      _
    $region43: #{tpu_custom_call.1} parent=1 // pred_check_branch
      %90 = sbr.rel (0) target = $region45
    $region44: #{tpu_custom_call.1} parent=1 // pred_region
      %91 = dma.done [#allocation6], 2048
    $region45: #{tpu_custom_call.1} parent=1 // pred_fallthru
      _
    // Predicated region
    $region46: #{tpu_custom_call.1} parent=1 // pred_check
      _
    $region47: #{tpu_custom_call.1} parent=1 // pred_check_branch
      %93 = sbr.rel (0) target = $region49
    $region48: #{tpu_custom_call.1} parent=1 // pred_region
      %94 = dma.done [#allocation6], 2048
    $region49: #{tpu_custom_call.1} parent=1 // pred_fallthru
      _
    // Predicated region
    $region50: #{tpu_custom_call.1} parent=1 // pred_check
      _
    $region51: #{tpu_custom_call.1} parent=1 // pred_check_branch
      %96 = sbr.rel (0) target = $region53
    $region52: #{tpu_custom_call.1} parent=1 // pred_region
      %97 = dma.done [#allocation9], 2048
    $region53: #{tpu_custom_call.1} parent=1 // pred_fallthru
      _
    // Predicated region
    $region54: #{tpu_custom_call.1} parent=1 // pred_check
      _
    $region55: #{tpu_custom_call.1} parent=1 // pred_check_branch
      %99 = sbr.rel (0) target = $region57
    $region56: #{tpu_custom_call.1} parent=1 // pred_region
      %100 = dma.done [#allocation9], 2048
    $region57: #{tpu_custom_call.1} parent=1 // pred_fallthru
      _
    %v101 = vld [vmem:[#allocation2] sm:$0xff]
    %v102 = vld [vmem:[#allocation2 + $0x8] sm:$0xff]
    %v103 = vld [vmem:[#allocation10] sm:$0xff]
    %v104 = vld [vmem:[#allocation10 + $0x8] sm:$0xff]
    %v105 = vld [vmem:[#allocation10 + $0x10] sm:$0xff]
    %v106 = vld [vmem:[#allocation10 + $0x18] sm:$0xff]
    %v107 = vld [vmem:[#allocation10 + $0x20] sm:$0xff]
    %v108 = vld [vmem:[#allocation10 + $0x28] sm:$0xff]
    %v109 = vld [vmem:[#allocation10 + $0x30] sm:$0xff]
    %v110 = vld [vmem:[#allocation10 + $0x38] sm:$0xff]
    %v111 = vld [vmem:[#allocation10 + $0x40] sm:$0xff]
    %v112 = vld [vmem:[#allocation10 + $0x48] sm:$0xff]
    %v113 = vld [vmem:[#allocation10 + $0x50] sm:$0xff]
    %v114 = vld [vmem:[#allocation10 + $0x58] sm:$0xff]
    %v115 = vld [vmem:[#allocation10 + $0x60] sm:$0xff]
    %v116 = vld [vmem:[#allocation10 + $0x68] sm:$0xff]
    %v117 = vld [vmem:[#allocation10 + $0x70] sm:$0xff]
    %v118 = vld [vmem:[#allocation10 + $0x78] sm:$0xff]
    %v119 = vld [vmem:[%s8] sm:$0x1]
    %v121 = vlaneseq
    %v122 = vshrl.u32 %v121, 7
    %v123 = vsub.s32 0, %v122
    %v124 = vrot.slane %v119, %v123
    %126 = vmatprep.subr.mxu0 0.0
    %127 = vmatpush1.msra.mxu0 %v118
    %128 = vmatprep.subr.mxu0 0.0
    %129 = vmatpush1.msra.mxu0 %v117
    %130 = vmatprep.subr.mxu0 0.0
    %131 = vmatpush1.msra.mxu0 %v116
    %132 = vmatprep.subr.mxu0 0.0
    %133 = vmatpush1.msra.mxu0 %v115
    %134 = vmatprep.subr.mxu0 0.0
    %135 = vmatpush1.msra.mxu0 %v114
    %136 = vmatprep.subr.mxu0 0.0
    %137 = vmatpush1.msra.mxu0 %v113
    %138 = vmatprep.subr.mxu0 0.0
    %139 = vmatpush1.msra.mxu0 %v112
    %140 = vmatprep.subr.mxu0 0.0
    %141 = vmatpush1.msra.mxu0 %v111
    %142 = vmatprep.subr.mxu0 0.0
    %143 = vmatpush1.msra.mxu0 %v110
    %144 = vmatprep.subr.mxu0 0.0
    %145 = vmatpush1.msra.mxu0 %v109
    %146 = vmatprep.subr.mxu0 0.0
    %147 = vmatpush1.msra.mxu0 %v108
    %148 = vmatprep.subr.mxu0 0.0
    %149 = vmatpush1.msra.mxu0 %v107
    %150 = vmatprep.subr.mxu0 0.0
    %151 = vmatpush1.msra.mxu0 %v106
    %152 = vmatprep.subr.mxu0 0.0
    %153 = vmatpush1.msra.mxu0 %v105
    %154 = vmatprep.subr.mxu0 0.0
    %155 = vmatpush1.msra.mxu0 %v104
    %156 = vmatprep.subr.mxu0 0.0
    %157 = vmatpush1.msra.mxu0 %v103
    %158 = vmatprep.subr.mxu0 0.0
    %159 = vmatpush2.msra.mxu0 0.0
    %160 = vmatprep.subr.mxu0 0.0
    %161 = vmatpush2.msra.mxu0 0.0
    %162 = vmatprep.subr.mxu0 0.0
    %163 = vmatpush2.msra.mxu0 0.0
    %164 = vmatprep.subr.mxu0 0.0
    %165 = vmatpush2.msra.mxu0 0.0
    %166 = vmatprep.subr.mxu0 0.0
    %167 = vmatpush2.msra.mxu0 0.0
    %168 = vmatprep.subr.mxu0 0.0
    %169 = vmatpush2.msra.mxu0 0.0
    %170 = vmatprep.subr.mxu0 0.0
    %171 = vmatpush2.msra.mxu0 0.0
    %172 = vmatprep.subr.mxu0 0.0
    %173 = vmatpush2.msra.mxu0 0.0
    %174 = vmatprep.subr.mxu0 0.0
    %175 = vmatpush2.msra.mxu0 0.0
    %176 = vmatprep.subr.mxu0 0.0
    %177 = vmatpush2.msra.mxu0 0.0
    %178 = vmatprep.subr.mxu0 0.0
    %179 = vmatpush2.msra.mxu0 0.0
    %180 = vmatprep.subr.mxu0 0.0
    %181 = vmatpush2.msra.mxu0 0.0
    %182 = vmatprep.subr.mxu0 0.0
    %183 = vmatpush2.msra.mxu0 0.0
    %184 = vmatprep.subr.mxu0 0.0
    %185 = vmatpush2.msra.mxu0 0.0
    %186 = vmatprep.subr.mxu0 0.0
    %187 = vmatpush2.msra.mxu0 0.0
    %188 = vmatprep.subr.mxu0 0.0
    %189 = vmatpush2.msra.mxu0 0.0
    %190 = vmatprep.mubr.f32.mxu0 0.0
    %191 = vmatmul.mubr.f32.gmra.mxu0 %v101
    %v192 = vpop.f32.mrf.mxu0
    %v193 = vadd.f32 %v124, %v192
    %v194 = vpop.f32.mrf.mxu0
    %195 = vmatprep.mubr.f32.mxu0 0.0
    %196 = vmatmul.mubr.f32.gmra.mxu0 %v102
    %v197 = vpop.f32.mrf.mxu0
    %v198 = vadd.f32 %v124, %v197
    %v199 = vpop.f32.mrf.mxu0
    %200 = vdwg.mxu0
    %v201 = vld [vmem:[#allocation5] sm:$0xff]
    %v202 = vld [vmem:[#allocation5 + $0x8] sm:$0xff]
    %v203 = vld [vmem:[#allocation5 + $0x10] sm:$0xff]
    %v204 = vld [vmem:[#allocation5 + $0x18] sm:$0xff]
    %v205 = vld [vmem:[#allocation5 + $0x20] sm:$0xff]
    %v206 = vld [vmem:[#allocation5 + $0x28] sm:$0xff]
    %v207 = vld [vmem:[#allocation5 + $0x30] sm:$0xff]
    %v208 = vld [vmem:[#allocation5 + $0x38] sm:$0xff]
    %v209 = vld [vmem:[#allocation5 + $0x40] sm:$0xff]
    %v210 = vld [vmem:[#allocation5 + $0x48] sm:$0xff]
    %v211 = vld [vmem:[#allocation5 + $0x50] sm:$0xff]
    %v212 = vld [vmem:[#allocation5 + $0x58] sm:$0xff]
    %v213 = vld [vmem:[#allocation5 + $0x60] sm:$0xff]
    %v214 = vld [vmem:[#allocation5 + $0x68] sm:$0xff]
    %v215 = vld [vmem:[#allocation5 + $0x70] sm:$0xff]
    %v216 = vld [vmem:[#allocation5 + $0x78] sm:$0xff]
    %v217 = vld [vmem:[%s2] sm:$0x1]
    %v219 = vlaneseq
    %v220 = vshrl.u32 %v219, 7
    %v221 = vsub.s32 0, %v220
    %v222 = vrot.slane %v217, %v221
    %224 = vmatprep.subr.mxu0 0.0
    %225 = vmatpush1.msra.mxu0 %v216
    %226 = vmatprep.subr.mxu0 0.0
    %227 = vmatpush1.msra.mxu0 %v215
    %228 = vmatprep.subr.mxu0 0.0
    %229 = vmatpush1.msra.mxu0 %v214
    %230 = vmatprep.subr.mxu0 0.0
    %231 = vmatpush1.msra.mxu0 %v213
    %232 = vmatprep.subr.mxu0 0.0
    %233 = vmatpush1.msra.mxu0 %v212
    %234 = vmatprep.subr.mxu0 0.0
    %235 = vmatpush1.msra.mxu0 %v211
    %236 = vmatprep.subr.mxu0 0.0
    %237 = vmatpush1.msra.mxu0 %v210
    %238 = vmatprep.subr.mxu0 0.0
    %239 = vmatpush1.msra.mxu0 %v209
    %240 = vmatprep.subr.mxu0 0.0
    %241 = vmatpush1.msra.mxu0 %v208
    %242 = vmatprep.subr.mxu0 0.0
    %243 = vmatpush1.msra.mxu0 %v207
    %244 = vmatprep.subr.mxu0 0.0
    %245 = vmatpush1.msra.mxu0 %v206
    %246 = vmatprep.subr.mxu0 0.0
    %247 = vmatpush1.msra.mxu0 %v205
    %248 = vmatprep.subr.mxu0 0.0
    %249 = vmatpush1.msra.mxu0 %v204
    %250 = vmatprep.subr.mxu0 0.0
    %251 = vmatpush1.msra.mxu0 %v203
    %252 = vmatprep.subr.mxu0 0.0
    %253 = vmatpush1.msra.mxu0 %v202
    %254 = vmatprep.subr.mxu0 0.0
    %255 = vmatpush1.msra.mxu0 %v201
    %256 = vmatprep.subr.mxu0 0.0
    %257 = vmatpush2.msra.mxu0 0.0
    %258 = vmatprep.subr.mxu0 0.0
    %259 = vmatpush2.msra.mxu0 0.0
    %260 = vmatprep.subr.mxu0 0.0
    %261 = vmatpush2.msra.mxu0 0.0
    %262 = vmatprep.subr.mxu0 0.0
    %263 = vmatpush2.msra.mxu0 0.0
    %264 = vmatprep.subr.mxu0 0.0
    %265 = vmatpush2.msra.mxu0 0.0
    %266 = vmatprep.subr.mxu0 0.0
    %267 = vmatpush2.msra.mxu0 0.0
    %268 = vmatprep.subr.mxu0 0.0
    %269 = vmatpush2.msra.mxu0 0.0
    %270 = vmatprep.subr.mxu0 0.0
    %271 = vmatpush2.msra.mxu0 0.0
    %272 = vmatprep.subr.mxu0 0.0
    %273 = vmatpush2.msra.mxu0 0.0
    %274 = vmatprep.subr.mxu0 0.0
    %275 = vmatpush2.msra.mxu0 0.0
    %276 = vmatprep.subr.mxu0 0.0
    %277 = vmatpush2.msra.mxu0 0.0
    %278 = vmatprep.subr.mxu0 0.0
    %279 = vmatpush2.msra.mxu0 0.0
    %280 = vmatprep.subr.mxu0 0.0
    %281 = vmatpush2.msra.mxu0 0.0
    %282 = vmatprep.subr.mxu0 0.0
    %283 = vmatpush2.msra.mxu0 0.0
    %284 = vmatprep.subr.mxu0 0.0
    %285 = vmatpush2.msra.mxu0 0.0
    %286 = vmatprep.subr.mxu0 0.0
    %287 = vmatpush2.msra.mxu0 0.0
    %288 = vmatprep.mubr.f32.mxu0 0.0
    %289 = vmatmul.mubr.f32.gmra.mxu0 %v101
    %v290 = vpop.f32.mrf.mxu0
    %v291 = vadd.f32 %v222, %v290
    %v292 = vpop.f32.mrf.mxu0
    %293 = vmatprep.mubr.f32.mxu0 0.0
    %294 = vmatmul.mubr.f32.gmra.mxu0 %v102
    %v295 = vpop.f32.mrf.mxu0
    %v296 = vadd.f32 %v222, %v295
    %v297 = vpop.f32.mrf.mxu0
    %298 = vdwg.mxu0
    %v299 = vmax.f32 %v291, 0.0
    %v300 = vmax.f32 %v296, 0.0
    %v301 = vld [vmem:[#allocation7] sm:$0xff]
    %v302 = vld [vmem:[#allocation7 + $0x8] sm:$0xff]
    %v303 = vld [vmem:[#allocation7 + $0x10] sm:$0xff]
    %v304 = vld [vmem:[#allocation7 + $0x18] sm:$0xff]
    %v305 = vld [vmem:[#allocation7 + $0x20] sm:$0xff]
    %v306 = vld [vmem:[#allocation7 + $0x28] sm:$0xff]
    %v307 = vld [vmem:[#allocation7 + $0x30] sm:$0xff]
    %v308 = vld [vmem:[#allocation7 + $0x38] sm:$0xff]
    %v309 = vld [vmem:[#allocation7 + $0x40] sm:$0xff]
    %v310 = vld [vmem:[#allocation7 + $0x48] sm:$0xff]
    %v311 = vld [vmem:[#allocation7 + $0x50] sm:$0xff]
    %v312 = vld [vmem:[#allocation7 + $0x58] sm:$0xff]
    %v313 = vld [vmem:[#allocation7 + $0x60] sm:$0xff]
    %v314 = vld [vmem:[#allocation7 + $0x68] sm:$0xff]
    %v315 = vld [vmem:[#allocation7 + $0x70] sm:$0xff]
    %v316 = vld [vmem:[#allocation7 + $0x78] sm:$0xff]
    %v317 = vld [vmem:[%s4] sm:$0x1]
    %v319 = vlaneseq
    %v320 = vshrl.u32 %v319, 7
    %v321 = vsub.s32 0, %v320
    %v322 = vrot.slane %v317, %v321
    %324 = vmatprep.subr.mxu0 0.0
    %325 = vmatpush1.msra.mxu0 %v316
    %326 = vmatprep.subr.mxu0 0.0
    %327 = vmatpush1.msra.mxu0 %v315
    %328 = vmatprep.subr.mxu0 0.0
    %329 = vmatpush1.msra.mxu0 %v314
    %330 = vmatprep.subr.mxu0 0.0
    %331 = vmatpush1.msra.mxu0 %v313
    %332 = vmatprep.subr.mxu0 0.0
    %333 = vmatpush1.msra.mxu0 %v312
    %334 = vmatprep.subr.mxu0 0.0
    %335 = vmatpush1.msra.mxu0 %v311
    %336 = vmatprep.subr.mxu0 0.0
    %337 = vmatpush1.msra.mxu0 %v310
    %338 = vmatprep.subr.mxu0 0.0
    %339 = vmatpush1.msra.mxu0 %v309
    %340 = vmatprep.subr.mxu0 0.0
    %341 = vmatpush1.msra.mxu0 %v308
    %342 = vmatprep.subr.mxu0 0.0
    %343 = vmatpush1.msra.mxu0 %v307
    %344 = vmatprep.subr.mxu0 0.0
    %345 = vmatpush1.msra.mxu0 %v306
    %346 = vmatprep.subr.mxu0 0.0
    %347 = vmatpush1.msra.mxu0 %v305
    %348 = vmatprep.subr.mxu0 0.0
    %349 = vmatpush1.msra.mxu0 %v304
    %350 = vmatprep.subr.mxu0 0.0
    %351 = vmatpush1.msra.mxu0 %v303
    %352 = vmatprep.subr.mxu0 0.0
    %353 = vmatpush1.msra.mxu0 %v302
    %354 = vmatprep.subr.mxu0 0.0
    %355 = vmatpush1.msra.mxu0 %v301
    %356 = vmatprep.subr.mxu0 0.0
    %357 = vmatpush2.msra.mxu0 0.0
    %358 = vmatprep.subr.mxu0 0.0
    %359 = vmatpush2.msra.mxu0 0.0
    %360 = vmatprep.subr.mxu0 0.0
    %361 = vmatpush2.msra.mxu0 0.0
    %362 = vmatprep.subr.mxu0 0.0
    %363 = vmatpush2.msra.mxu0 0.0
    %364 = vmatprep.subr.mxu0 0.0
    %365 = vmatpush2.msra.mxu0 0.0
    %366 = vmatprep.subr.mxu0 0.0
    %367 = vmatpush2.msra.mxu0 0.0
    %368 = vmatprep.subr.mxu0 0.0
    %369 = vmatpush2.msra.mxu0 0.0
    %370 = vmatprep.subr.mxu0 0.0
    %371 = vmatpush2.msra.mxu0 0.0
    %372 = vmatprep.subr.mxu0 0.0
    %373 = vmatpush2.msra.mxu0 0.0
    %374 = vmatprep.subr.mxu0 0.0
    %375 = vmatpush2.msra.mxu0 0.0
    %376 = vmatprep.subr.mxu0 0.0
    %377 = vmatpush2.msra.mxu0 0.0
    %378 = vmatprep.subr.mxu0 0.0
    %379 = vmatpush2.msra.mxu0 0.0
    %380 = vmatprep.subr.mxu0 0.0
    %381 = vmatpush2.msra.mxu0 0.0
    %382 = vmatprep.subr.mxu0 0.0
    %383 = vmatpush2.msra.mxu0 0.0
    %384 = vmatprep.subr.mxu0 0.0
    %385 = vmatpush2.msra.mxu0 0.0
    %386 = vmatprep.subr.mxu0 0.0
    %387 = vmatpush2.msra.mxu0 0.0
    %388 = vmatprep.mubr.f32.mxu0 0.0
    %389 = vmatmul.mubr.f32.gmra.mxu0 %v299
    %v390 = vpop.f32.mrf.mxu0
    %v391 = vadd.f32 %v322, %v390
    %v392 = vpop.f32.mrf.mxu0
    %393 = vmatprep.mubr.f32.mxu0 0.0
    %394 = vmatmul.mubr.f32.gmra.mxu0 %v300
    %v395 = vpop.f32.mrf.mxu0
    %v396 = vadd.f32 %v322, %v395
    %v397 = vpop.f32.mrf.mxu0
    %398 = vdwg.mxu0
    %v399 = vmax.f32 %v391, 0.0
    %v400 = vmax.f32 %v396, 0.0
    %v401 = vld [vmem:[#allocation8] sm:$0xff]
    %v402 = vld [vmem:[#allocation8 + $0x8] sm:$0xff]
    %v403 = vld [vmem:[#allocation8 + $0x10] sm:$0xff]
    %v404 = vld [vmem:[#allocation8 + $0x18] sm:$0xff]
    %v405 = vld [vmem:[#allocation8 + $0x20] sm:$0xff]
    %v406 = vld [vmem:[#allocation8 + $0x28] sm:$0xff]
    %v407 = vld [vmem:[#allocation8 + $0x30] sm:$0xff]
    %v408 = vld [vmem:[#allocation8 + $0x38] sm:$0xff]
    %v409 = vld [vmem:[#allocation8 + $0x40] sm:$0xff]
    %v410 = vld [vmem:[#allocation8 + $0x48] sm:$0xff]
    %v411 = vld [vmem:[#allocation8 + $0x50] sm:$0xff]
    %v412 = vld [vmem:[#allocation8 + $0x58] sm:$0xff]
    %v413 = vld [vmem:[#allocation8 + $0x60] sm:$0xff]
    %v414 = vld [vmem:[#allocation8 + $0x68] sm:$0xff]
    %v415 = vld [vmem:[#allocation8 + $0x70] sm:$0xff]
    %v416 = vld [vmem:[#allocation8 + $0x78] sm:$0xff]
    %v417 = vld [vmem:[%s6] sm:$0x1]
    %v419 = vlaneseq
    %v420 = vshrl.u32 %v419, 7
    %v421 = vsub.s32 0, %v420
    %v422 = vrot.slane %v417, %v421
    %424 = vmatprep.subr.mxu0 0.0
    %425 = vmatpush1.msra.mxu0 %v416
    %426 = vmatprep.subr.mxu0 0.0
    %427 = vmatpush1.msra.mxu0 %v415
    %428 = vmatprep.subr.mxu0 0.0
    %429 = vmatpush1.msra.mxu0 %v414
    %430 = vmatprep.subr.mxu0 0.0
    %431 = vmatpush1.msra.mxu0 %v413
    %432 = vmatprep.subr.mxu0 0.0
    %433 = vmatpush1.msra.mxu0 %v412
    %434 = vmatprep.subr.mxu0 0.0
    %435 = vmatpush1.msra.mxu0 %v411
    %436 = vmatprep.subr.mxu0 0.0
    %437 = vmatpush1.msra.mxu0 %v410
    %438 = vmatprep.subr.mxu0 0.0
    %439 = vmatpush1.msra.mxu0 %v409
    %440 = vmatprep.subr.mxu0 0.0
    %441 = vmatpush1.msra.mxu0 %v408
    %442 = vmatprep.subr.mxu0 0.0
    %443 = vmatpush1.msra.mxu0 %v407
    %444 = vmatprep.subr.mxu0 0.0
    %445 = vmatpush1.msra.mxu0 %v406
    %446 = vmatprep.subr.mxu0 0.0
    %447 = vmatpush1.msra.mxu0 %v405
    %448 = vmatprep.subr.mxu0 0.0
    %449 = vmatpush1.msra.mxu0 %v404
    %450 = vmatprep.subr.mxu0 0.0
    %451 = vmatpush1.msra.mxu0 %v403
    %452 = vmatprep.subr.mxu0 0.0
    %453 = vmatpush1.msra.mxu0 %v402
    %454 = vmatprep.subr.mxu0 0.0
    %455 = vmatpush1.msra.mxu0 %v401
    %456 = vmatprep.subr.mxu0 0.0
    %457 = vmatpush2.msra.mxu0 0.0
    %458 = vmatprep.subr.mxu0 0.0
    %459 = vmatpush2.msra.mxu0 0.0
    %460 = vmatprep.subr.mxu0 0.0
    %461 = vmatpush2.msra.mxu0 0.0
    %462 = vmatprep.subr.mxu0 0.0
    %463 = vmatpush2.msra.mxu0 0.0
    %464 = vmatprep.subr.mxu0 0.0
    %465 = vmatpush2.msra.mxu0 0.0
    %466 = vmatprep.subr.mxu0 0.0
    %467 = vmatpush2.msra.mxu0 0.0
    %468 = vmatprep.subr.mxu0 0.0
    %469 = vmatpush2.msra.mxu0 0.0
    %470 = vmatprep.subr.mxu0 0.0
    %471 = vmatpush2.msra.mxu0 0.0
    %472 = vmatprep.subr.mxu0 0.0
    %473 = vmatpush2.msra.mxu0 0.0
    %474 = vmatprep.subr.mxu0 0.0
    %475 = vmatpush2.msra.mxu0 0.0
    %476 = vmatprep.subr.mxu0 0.0
    %477 = vmatpush2.msra.mxu0 0.0
    %478 = vmatprep.subr.mxu0 0.0
    %479 = vmatpush2.msra.mxu0 0.0
    %480 = vmatprep.subr.mxu0 0.0
    %481 = vmatpush2.msra.mxu0 0.0
    %482 = vmatprep.subr.mxu0 0.0
    %483 = vmatpush2.msra.mxu0 0.0
    %484 = vmatprep.subr.mxu0 0.0
    %485 = vmatpush2.msra.mxu0 0.0
    %486 = vmatprep.subr.mxu0 0.0
    %487 = vmatpush2.msra.mxu0 0.0
    %488 = vmatprep.mubr.f32.mxu0 0.0
    %489 = vmatmul.mubr.f32.gmra.mxu0 %v399
    %v490 = vpop.f32.mrf.mxu0
    %v491 = vadd.f32 %v422, %v490
    %v492 = vpop.f32.mrf.mxu0
    %493 = vmatprep.mubr.f32.mxu0 0.0
    %494 = vmatmul.mubr.f32.gmra.mxu0 %v400
    %v495 = vpop.f32.mrf.mxu0
    %v496 = vadd.f32 %v422, %v495
    %v497 = vpop.f32.mrf.mxu0
    %498 = vdwg.mxu0
    %v499 = vmax.f32 %v491, 0.0
    %v500 = vmax.f32 %v496, 0.0
    %v501 = vadd.f32 %v499, %v193
    %v502 = vadd.f32 %v500, %v198
    %503 = vst [vmem:[#allocation11] sm:$0xff] %v501
    %504 = vst [vmem:[#allocation11 + $0x8] sm:$0xff] %v502
    // Predicated region
    $region58: #{tpu_custom_call.1} parent=1 // pred_check
      _
    $region59: #{tpu_custom_call.1} parent=1 // pred_check_branch
      %506 = sbr.rel (0) target = $region61
    $region60: #{tpu_custom_call.1} parent=1 // pred_region
      %s508 = ssub.s32 256, 256
      %509 = vsyncadd [#allocation4], %s508
      %s510 = sshll.u32 [#allocation11], 4
      %s511 = int_to_ptr.vmem [resolvable:$true] %s510
      %516 = dma.vmem_to_hbm [thread:$0]  %s511, 256, %s9, [#allocation4], 128, 128, 8
    $region61: #{tpu_custom_call.1} parent=1 // pred_fallthru
      _
    // Predicated region
    $region62: #{tpu_custom_call.1} parent=1 // pred_check
      _
    $region63: #{tpu_custom_call.1} parent=1 // pred_check_branch
      %518 = sbr.rel (0) target = $region65
    $region64: #{tpu_custom_call.1} parent=1 // pred_region
      %519 = dma.done [#allocation4], 256
    $region65: #{tpu_custom_call.1} parent=1 // pred_fallthru
      _
    %520 = vsyncpa [#allocation3], 1
    %521 = vsyncpa [#allocation6], 1
    %522 = vsyncpa [#allocation9], 1
    %523 = vsyncpa [#allocation4], 1

</llo_original>
